<compile_context>
chip_gen: v7x
topology: tpu7x:2x2x1
jax: 0.10.0
libtpu: 0.0.40
codegen_flags: <defaults>
</compile_context>

<pallas_src>
import functools

import jax
import jax.numpy as jnp
from jax.experimental import pallas as pl
from jax.experimental.pallas import tpu as pltpu


# --------------------------------------------------------------------------
# kernels
# --------------------------------------------------------------------------
def _conv_relu_stats_kernel(x_ref, w_ref, b_ref, o_ref, stats_ref,
                            *, tl, l_out, need_mask):
    """One (n, L-tile) grid step of Conv1d + bias + ReLU + partial BN stats.

    x_ref     : (1, K*Cin, TL)   bf16  im2col tile
    w_ref     : (Cout, K*Cin)    bf16  flattened conv weight
    b_ref     : (Cout, 1)        f32   conv bias
    o_ref     : (1, Cout, TL)    f32   post-ReLU activation tile
    stats_ref : (1, 1, Cout, 2)  f32   per-tile per-channel [sum, sum-of-squares]
    """
    # Single MXU matmul: contraction over K*Cin, f32 accumulation.
    acc = jnp.dot(w_ref[...], x_ref[0], preferred_element_type=jnp.float32)
    a = jnp.maximum(acc + b_ref[...], 0.0)          # (Cout, TL) f32
    o_ref[0] = a.astype(o_ref.dtype)

    # Partial BatchNorm statistics (mask lanes past L_out on the last tile).
    if need_mask:
        j = pl.program_id(1)
        lane = jax.lax.broadcasted_iota(jnp.int32, a.shape, 1)
        a = jnp.where(j * tl + lane < l_out, a, 0.0)
    s = jnp.sum(a, axis=1, keepdims=True)           # (Cout, 1)
    ss = jnp.sum(a * a, axis=1, keepdims=True)      # (Cout, 1)
    stats_ref[0, 0] = jnp.concatenate([s, ss], axis=1)   # (Cout, 2)


def _affine_kernel(a_ref, scale_ref, shift_ref, o_ref):
    """Per-channel affine normalization: out = a * scale + shift."""
    o_ref[0] = a_ref[0] * scale_ref[...] + shift_ref[...]


# --------------------------------------------------------------------------
# wrappers
# --------------------------------------------------------------------------
def _pad_amounts(kernel_size, padding, dilation):
    if padding == "same":
        total = dilation * (kernel_size - 1)
        left = total // 2
        return left, total - left
    if padding == "valid":
        return 0, 0
    p = int(padding)
    return p, p


def _choose_tile(l_out):
    # Biggest lane-dense tile that comfortably fits VMEM with double buffering.
    return l_out if l_out <= 512 else 512


def single_conv(x, w, b, gamma, beta, *, kernel_size, padding, dilation, eps=1e-5):
    """SingleConv forward.  x: (N, Cin, L) f32, w: (Cout, Cin, K) -> (N, Cout, L_out) f32."""
    N, Cin, L = x.shape
    Cout, _, K = w.shape
    assert K == kernel_size

    left, right = _pad_amounts(K, padding, dilation)
    x_pad = jnp.pad(x.astype(jnp.float32), ((0, 0), (0, 0), (left, right)))
    L_out = x_pad.shape[2] - dilation * (K - 1)
    KC = K * Cin

    # im2col (XLA-side slicing): channel order is (k major, c minor), matching w2d.
    x_col = jnp.concatenate(
        [x_pad[:, :, k * dilation: k * dilation + L_out] for k in range(K)],
        axis=1).astype(jnp.bfloat16)                       # (N, KC, L_out)
    w2d = jnp.transpose(w, (0, 2, 1)).reshape(Cout, KC).astype(jnp.bfloat16)
    b2d = b.reshape(Cout, 1).astype(jnp.float32)

    TL = _choose_tile(L_out)
    T = pl.cdiv(L_out, TL)
    need_mask = (L_out % TL) != 0

    # VMEM budget with headroom (double-buffered in/out tiles + resident weights),
    # clamped to stay within every generation's scoped/physical limits (v7x: 64 MiB).
    block_bytes = 2 * (2 * KC * TL + 4 * Cout * TL + 4 * Cout * 2) + 2 * Cout * KC + 4 * Cout
    vmem_limit = int(min(max(4 * block_bytes, 8 << 20), 32 << 20))

    compiler_params = pltpu.CompilerParams(
        dimension_semantics=("parallel", "parallel"),
        vmem_limit_bytes=vmem_limit)

    conv_cost = pl.CostEstimate(
        flops=2 * N * L_out * KC * Cout,
        transcendentals=0,
        bytes_accessed=(x_col.size * 2 + w2d.size * 2 + b2d.size * 4
                        + N * Cout * L_out * 4 + N * T * Cout * 2 * 4))

    conv_kernel = functools.partial(_conv_relu_stats_kernel,
                                    tl=TL, l_out=L_out, need_mask=need_mask)

    a, stats = pl.pallas_call(
        conv_kernel,
        out_shape=(jax.ShapeDtypeStruct((N, Cout, L_out), jnp.float32),
                   jax.ShapeDtypeStruct((N, T, Cout, 2), jnp.float32)),
        grid_spec=pltpu.PrefetchScalarGridSpec(
            num_scalar_prefetch=0,
            grid=(N, T),
            in_specs=[pl.BlockSpec((1, KC, TL), lambda n, j: (n, 0, j)),
                      pl.BlockSpec((Cout, KC), lambda n, j: (0, 0)),
                      pl.BlockSpec((Cout, 1), lambda n, j: (0, 0))],
            out_specs=[pl.BlockSpec((1, Cout, TL), lambda n, j: (n, 0, j)),
                       pl.BlockSpec((1, 1, Cout, 2), lambda n, j: (n, j, 0, 0))]),
        compiler_params=compiler_params,
        cost_estimate=conv_cost,
    )(x_col, w2d, b2d)

    # Global training-mode batch statistics (biased variance) from the partial sums.
    count = jnp.float32(N * L_out)
    ch_sum = jnp.sum(stats[..., 0], axis=(0, 1))          # (Cout,)
    ch_sqsum = jnp.sum(stats[..., 1], axis=(0, 1))        # (Cout,)
    mean = ch_sum / count
    var = jnp.maximum(ch_sqsum / count - mean * mean, 0.0)
    inv = jax.lax.rsqrt(var + eps)
    g32 = gamma.astype(jnp.float32)
    scale = (g32 * inv).reshape(Cout, 1)
    shift = (beta.astype(jnp.float32) - mean * g32 * inv).reshape(Cout, 1)

    out = pl.pallas_call(
        _affine_kernel,
        out_shape=jax.ShapeDtypeStruct((N, Cout, L_out), jnp.float32),
        grid_spec=pltpu.PrefetchScalarGridSpec(
            num_scalar_prefetch=0,
            grid=(N, T),
            in_specs=[pl.BlockSpec((1, Cout, TL), lambda n, j: (n, 0, j)),
                      pl.BlockSpec((Cout, 1), lambda n, j: (0, 0)),
                      pl.BlockSpec((Cout, 1), lambda n, j: (0, 0))],
            out_specs=pl.BlockSpec((1, Cout, TL), lambda n, j: (n, 0, j))),
        compiler_params=compiler_params,
        cost_estimate=pl.CostEstimate(
            flops=2 * N * Cout * L_out, transcendentals=0,
            bytes_accessed=2 * N * Cout * L_out * 4 + 2 * Cout * 4),
    )(a, scale, shift)
    return out


def double_conv(x, params, *, kernel_size, padding, dilation):
    """DoubleConv forward.  x: (N, C_in, L) -> (N, C_out, L_out)."""
    (w1, b1, g1, be1), (w2, b2, g2, be2) = params
    h = single_conv(x, w1, b1, g1, be1,
                    kernel_size=kernel_size, padding=padding, dilation=dilation)
    return single_conv(h, w2, b2, g2, be2,
                       kernel_size=kernel_size, padding=padding, dilation=dilation)


# --------------------------------------------------------------------------
# pure-JAX reference (same math: bf16 conv operands, f32 everything else)
# --------------------------------------------------------------------------
def _ref_single_conv(x, w, b, gamma, beta, *, kernel_size, padding, dilation, eps=1e-5):
    left, right = _pad_amounts(kernel_size, padding, dilation)
    x_pad = jnp.pad(x.astype(jnp.float32), ((0, 0), (0, 0), (left, right)))
    y = jax.lax.conv_general_dilated(
        x_pad.astype(jnp.bfloat16), w.astype(jnp.bfloat16),
        window_strides=(1,), padding="VALID", rhs_dilation=(dilation,),
        dimension_numbers=("NCH", "OIH", "NCH"),
        preferred_element_type=jnp.float32)
    a = jnp.maximum(y + b[None, :, None], 0.0)
    mean = jnp.mean(a, axis=(0, 2), keepdims=True)
    var = jnp.mean(jnp.square(a - mean), axis=(0, 2), keepdims=True)
    return (a - mean) * jax.lax.rsqrt(var + eps) * gamma[None, :, None] + beta[None, :, None]


def _ref_double_conv(x, params, **kw):
    (w1, b1, g1, be1), (w2, b2, g2, be2) = params
    h = _ref_single_conv(x, w1, b1, g1, be1, **kw)
    return _ref_single_conv(h, w2, b2, g2, be2, **kw)


# --------------------------------------------------------------------------
# parameter init (PyTorch Conv1d weight layout: (Cout, Cin, K))
# --------------------------------------------------------------------------
def init_params(key, in_channels, out_channels, kernel_size):
    def layer(k, cin, cout):
        k1, k2, k3, k4 = jax.random.split(k, 4)
        w = 0.1 * jax.random.normal(k1, (cout, cin, kernel_size), jnp.float32)
        b = 0.1 * jax.random.normal(k2, (cout,), jnp.float32)
        gamma = 1.0 + 0.1 * jax.random.normal(k3, (cout,), jnp.float32)
        beta = 0.1 * jax.random.normal(k4, (cout,), jnp.float32)
        return (w, b, gamma, beta)
    ka, kb = jax.random.split(key)
    return (layer(ka, in_channels, out_channels),
            layer(kb, out_channels, out_channels))


if __name__ == "__main__":
    # DoubleConv(in_channels=4, out_channels=8, activation=nn.ReLU(),
    #            kernel_size=3, padding='same', dilation=1)
    N, C_IN, C_OUT, L = 2, 4, 8, 16
    K, PADDING, DILATION = 3, "same", 1

    key = jax.random.PRNGKey(0)
    k_x, k_p = jax.random.split(key)

    # PyTorch Conv1d layout (N, C, L) is used natively by the kernels.
    x = jax.random.normal(k_x, (N, C_IN, L), jnp.float32)
    params = init_params(k_p, C_IN, C_OUT, K)

    fwd = jax.jit(functools.partial(double_conv,
                                    kernel_size=K, padding=PADDING, dilation=DILATION))
    out = jax.block_until_ready(fwd(x, params))

    ref = _ref_double_conv(x, params,
                           kernel_size=K, padding=PADDING, dilation=DILATION)
    assert out.shape == (N, C_OUT, L)
    assert jnp.allclose(out, ref, atol=1e-4, rtol=1e-4), "mismatch vs JAX reference"

    print("KERNEL_OK")
</pallas_src>

<mosaic_0001>
module attributes {stable_mosaic.version = 11 : i64} {
  func.func @_conv_relu_stats_kernel(%arg0: i32, %arg1: i32, %arg2: memref<1x12x16xbf16, #tpu.memory_space<vmem>>, %arg3: memref<8x12xbf16, #tpu.memory_space<vmem>>, %arg4: memref<8x1xf32, #tpu.memory_space<vmem>>, %arg5: memref<1x8x16xf32, #tpu.memory_space<vmem>>, %arg6: memref<1x1x8x2xf32, #tpu.memory_space<vmem>>) attributes {dimension_semantics = [#tpu.dimension_semantics<parallel>, #tpu.dimension_semantics<parallel>], iteration_bounds = array<i64: 2, 1>, scalar_prefetch = 0 : i64, scratch_operands = 0 : i64, tpu.core_type = #tpu.core_type<tc>, window_params = [{transform_indices = @transform_0, window_bounds = array<i64: 1, 12, 16>}, {pipeline_mode = #tpu.pipeline_mode<synchronous>, transform_indices = @transform_1, window_bounds = array<i64: 8, 12>}, {pipeline_mode = #tpu.pipeline_mode<synchronous>, transform_indices = @transform_2, window_bounds = array<i64: 8, 1>}, {transform_indices = @transform_3, window_bounds = array<i64: 1, 8, 16>}, {transform_indices = @transform_4, window_bounds = array<i64: 1, 1, 8, 2>}]} {
    %c0 = arith.constant 0 : index
    %c0_0 = arith.constant 0 : index
    %0 = vector.load %arg3[%c0, %c0_0] : memref<8x12xbf16, #tpu.memory_space<vmem>>, vector<8x12xbf16>
    %c0_1 = arith.constant 0 : index
    %c0_2 = arith.constant 0 : index
    %c0_3 = arith.constant 0 : index
    %1 = vector.load %arg2[%c0_1, %c0_2, %c0_3] : memref<1x12x16xbf16, #tpu.memory_space<vmem>>, vector<1x12x16xbf16>
    %2 = vector.shape_cast %1 : vector<1x12x16xbf16> to vector<12x16xbf16>
    %cst = arith.constant dense<0.000000e+00> : vector<8x16xf32>
    %3 = tpu.matmul %0, %2, %cst {dimension_numbers = #tpu.dot_dimension_numbers<[1], [0], [0], [1], [0, 0, 1, 1], [], []>} : vector<8x12xbf16>, vector<12x16xbf16>, vector<8x16xf32> -> vector<8x16xf32>
    %c0_4 = arith.constant 0 : index
    %c0_5 = arith.constant 0 : index
    %4 = vector.load %arg4[%c0_4, %c0_5] : memref<8x1xf32, #tpu.memory_space<vmem>>, vector<8x1xf32>
    %5 = vector.broadcast %4 : vector<8x1xf32> to vector<8x16xf32>
    %6 = arith.addf %3, %5 : vector<8x16xf32>
    %cst_6 = arith.constant 0.000000e+00 : f32
    %7 = vector.broadcast %cst_6 : f32 to vector<8x16xf32>
    %8 = arith.maximumf %6, %7 : vector<8x16xf32>
    %c0_7 = arith.constant 0 : index
    %c0_8 = arith.constant 0 : index
    %c0_9 = arith.constant 0 : index
    %9 = vector.load %arg5[%c0_7, %c0_8, %c0_9] : memref<1x8x16xf32, #tpu.memory_space<vmem>>, vector<1x8x16xf32>
    %10 = vector.shape_cast %9 : vector<1x8x16xf32> to vector<8x16xf32>
    %11 = vector.shape_cast %8 : vector<8x16xf32> to vector<1x8x16xf32>
    tpu.vector_store %arg5[%c0_7, %c0_8, %c0_9], %11 {strides = array<i32>} : memref<1x8x16xf32, #tpu.memory_space<vmem>>, vector<1x8x16xf32>,
    %cst_10 = arith.constant dense<0.000000e+00> : vector<8xf32>
    %12 = vector.multi_reduction <add>, %8, %cst_10 [1] : vector<8x16xf32> to vector<8xf32>
    %13 = vector.shape_cast %12 : vector<8xf32> to vector<8x1xf32>
    %14 = arith.mulf %8, %8 : vector<8x16xf32>
    %cst_11 = arith.constant dense<0.000000e+00> : vector<8xf32>
    %15 = vector.multi_reduction <add>, %14, %cst_11 [1] : vector<8x16xf32> to vector<8xf32>
    %16 = vector.shape_cast %15 : vector<8xf32> to vector<8x1xf32>
    %17 = tpu.concatenate %13, %16 in 1 : vector<8x1xf32>, vector<8x1xf32> -> vector<8x2xf32>
    %c0_12 = arith.constant 0 : index
    %c0_13 = arith.constant 0 : index
    %c0_14 = arith.constant 0 : index
    %c0_15 = arith.constant 0 : index
    %18 = vector.load %arg6[%c0_12, %c0_13, %c0_14, %c0_15] : memref<1x1x8x2xf32, #tpu.memory_space<vmem>>, vector<1x1x8x2xf32>
    %19 = vector.shape_cast %18 : vector<1x1x8x2xf32> to vector<8x2xf32>
    %20 = vector.shape_cast %17 : vector<8x2xf32> to vector<1x1x8x2xf32>
    tpu.vector_store %arg6[%c0_12, %c0_13, %c0_14, %c0_15], %20 {strides = array<i32>} : memref<1x1x8x2xf32, #tpu.memory_space<vmem>>, vector<1x1x8x2xf32>,
    return
  }
  func.func @transform_0(%arg0: i32, %arg1: i32) -> (i32, i32, i32) {
    %c0_i32 = arith.constant 0 : i32
    %c0_i32_0 = arith.constant 0 : i32
    return %arg0, %c0_i32, %arg1 : i32, i32, i32
  }
  func.func @transform_1(%arg0: i32, %arg1: i32) -> (i32, i32) {
    %c0_i32 = arith.constant 0 : i32
    %c0_i32_0 = arith.constant 0 : i32
    %c0_i32_1 = arith.constant 0 : i32
    return %c0_i32, %c0_i32_0 : i32, i32
  }
  func.func @transform_2(%arg0: i32, %arg1: i32) -> (i32, i32) {
    %c0_i32 = arith.constant 0 : i32
    %c0_i32_0 = arith.constant 0 : i32
    %c0_i32_1 = arith.constant 0 : i32
    return %c0_i32, %c0_i32_0 : i32, i32
  }
  func.func @transform_3(%arg0: i32, %arg1: i32) -> (i32, i32, i32) {
    %c0_i32 = arith.constant 0 : i32
    %c0_i32_0 = arith.constant 0 : i32
    return %arg0, %c0_i32, %arg1 : i32, i32, i32
  }
  func.func @transform_4(%arg0: i32, %arg1: i32) -> (i32, i32, i32, i32) {
    %c0_i32 = arith.constant 0 : i32
    %c0_i32_0 = arith.constant 0 : i32
    %c0_i32_1 = arith.constant 0 : i32
    return %arg0, %arg1, %c0_i32, %c0_i32_0 : i32, i32, i32, i32
  }
}

module attributes {stable_mosaic.version = 11 : i64} {
  func.func @_affine_kernel(%arg0: i32, %arg1: i32, %arg2: memref<1x8x16xf32, #tpu.memory_space<vmem>>, %arg3: memref<8x1xf32, #tpu.memory_space<vmem>>, %arg4: memref<8x1xf32, #tpu.memory_space<vmem>>, %arg5: memref<1x8x16xf32, #tpu.memory_space<vmem>>) attributes {dimension_semantics = [#tpu.dimension_semantics<parallel>, #tpu.dimension_semantics<parallel>], iteration_bounds = array<i64: 2, 1>, scalar_prefetch = 0 : i64, scratch_operands = 0 : i64, tpu.core_type = #tpu.core_type<tc>, window_params = [{transform_indices = @transform_0, window_bounds = array<i64: 1, 8, 16>}, {pipeline_mode = #tpu.pipeline_mode<synchronous>, transform_indices = @transform_1, window_bounds = array<i64: 8, 1>}, {pipeline_mode = #tpu.pipeline_mode<synchronous>, transform_indices = @transform_2, window_bounds = array<i64: 8, 1>}, {transform_indices = @transform_3, window_bounds = array<i64: 1, 8, 16>}]} {
    %c0 = arith.constant 0 : index
    %c0_0 = arith.constant 0 : index
    %c0_1 = arith.constant 0 : index
    %0 = vector.load %arg2[%c0, %c0_0, %c0_1] : memref<1x8x16xf32, #tpu.memory_space<vmem>>, vector<1x8x16xf32>
    %1 = vector.shape_cast %0 : vector<1x8x16xf32> to vector<8x16xf32>
    %c0_2 = arith.constant 0 : index
    %c0_3 = arith.constant 0 : index
    %2 = vector.load %arg3[%c0_2, %c0_3] : memref<8x1xf32, #tpu.memory_space<vmem>>, vector<8x1xf32>
    %3 = vector.broadcast %2 : vector<8x1xf32> to vector<8x16xf32>
    %4 = arith.mulf %1, %3 : vector<8x16xf32>
    %c0_4 = arith.constant 0 : index
    %c0_5 = arith.constant 0 : index
    %5 = vector.load %arg4[%c0_4, %c0_5] : memref<8x1xf32, #tpu.memory_space<vmem>>, vector<8x1xf32>
    %6 = vector.broadcast %5 : vector<8x1xf32> to vector<8x16xf32>
    %7 = arith.addf %4, %6 : vector<8x16xf32>
    %c0_6 = arith.constant 0 : index
    %c0_7 = arith.constant 0 : index
    %c0_8 = arith.constant 0 : index
    %8 = vector.load %arg5[%c0_6, %c0_7, %c0_8] : memref<1x8x16xf32, #tpu.memory_space<vmem>>, vector<1x8x16xf32>
    %9 = vector.shape_cast %8 : vector<1x8x16xf32> to vector<8x16xf32>
    %10 = vector.shape_cast %7 : vector<8x16xf32> to vector<1x8x16xf32>
    tpu.vector_store %arg5[%c0_6, %c0_7, %c0_8], %10 {strides = array<i32>} : memref<1x8x16xf32, #tpu.memory_space<vmem>>, vector<1x8x16xf32>,
    return
  }
  func.func @transform_0(%arg0: i32, %arg1: i32) -> (i32, i32, i32) {
    %c0_i32 = arith.constant 0 : i32
    %c0_i32_0 = arith.constant 0 : i32
    return %arg0, %c0_i32, %arg1 : i32, i32, i32
  }
  func.func @transform_1(%arg0: i32, %arg1: i32) -> (i32, i32) {
    %c0_i32 = arith.constant 0 : i32
    %c0_i32_0 = arith.constant 0 : i32
    %c0_i32_1 = arith.constant 0 : i32
    return %c0_i32, %c0_i32_0 : i32, i32
  }
  func.func @transform_2(%arg0: i32, %arg1: i32) -> (i32, i32) {
    %c0_i32 = arith.constant 0 : i32
    %c0_i32_0 = arith.constant 0 : i32
    %c0_i32_1 = arith.constant 0 : i32
    return %c0_i32, %c0_i32_0 : i32, i32
  }
  func.func @transform_3(%arg0: i32, %arg1: i32) -> (i32, i32, i32) {
    %c0_i32 = arith.constant 0 : i32
    %c0_i32_0 = arith.constant 0 : i32
    return %arg0, %c0_i32, %arg1 : i32, i32, i32
  }
}

module attributes {stable_mosaic.version = 11 : i64} {
  func.func @_conv_relu_stats_kernel(%arg0: i32, %arg1: i32, %arg2: memref<1x24x16xbf16, #tpu.memory_space<vmem>>, %arg3: memref<8x24xbf16, #tpu.memory_space<vmem>>, %arg4: memref<8x1xf32, #tpu.memory_space<vmem>>, %arg5: memref<1x8x16xf32, #tpu.memory_space<vmem>>, %arg6: memref<1x1x8x2xf32, #tpu.memory_space<vmem>>) attributes {dimension_semantics = [#tpu.dimension_semantics<parallel>, #tpu.dimension_semantics<parallel>], iteration_bounds = array<i64: 2, 1>, scalar_prefetch = 0 : i64, scratch_operands = 0 : i64, tpu.core_type = #tpu.core_type<tc>, window_params = [{transform_indices = @transform_0, window_bounds = array<i64: 1, 24, 16>}, {pipeline_mode = #tpu.pipeline_mode<synchronous>, transform_indices = @transform_1, window_bounds = array<i64: 8, 24>}, {pipeline_mode = #tpu.pipeline_mode<synchronous>, transform_indices = @transform_2, window_bounds = array<i64: 8, 1>}, {transform_indices = @transform_3, window_bounds = array<i64: 1, 8, 16>}, {transform_indices = @transform_4, window_bounds = array<i64: 1, 1, 8, 2>}]} {
    %c0 = arith.constant 0 : index
    %c0_0 = arith.constant 0 : index
    %0 = vector.load %arg3[%c0, %c0_0] : memref<8x24xbf16, #tpu.memory_space<vmem>>, vector<8x24xbf16>
    %c0_1 = arith.constant 0 : index
    %c0_2 = arith.constant 0 : index
    %c0_3 = arith.constant 0 : index
    %1 = vector.load %arg2[%c0_1, %c0_2, %c0_3] : memref<1x24x16xbf16, #tpu.memory_space<vmem>>, vector<1x24x16xbf16>
    %2 = vector.shape_cast %1 : vector<1x24x16xbf16> to vector<24x16xbf16>
    %cst = arith.constant dense<0.000000e+00> : vector<8x16xf32>
    %3 = tpu.matmul %0, %2, %cst {dimension_numbers = #tpu.dot_dimension_numbers<[1], [0], [0], [1], [0, 0, 1, 1], [], []>} : vector<8x24xbf16>, vector<24x16xbf16>, vector<8x16xf32> -> vector<8x16xf32>
    %c0_4 = arith.constant 0 : index
    %c0_5 = arith.constant 0 : index
    %4 = vector.load %arg4[%c0_4, %c0_5] : memref<8x1xf32, #tpu.memory_space<vmem>>, vector<8x1xf32>
    %5 = vector.broadcast %4 : vector<8x1xf32> to vector<8x16xf32>
    %6 = arith.addf %3, %5 : vector<8x16xf32>
    %cst_6 = arith.constant 0.000000e+00 : f32
    %7 = vector.broadcast %cst_6 : f32 to vector<8x16xf32>
    %8 = arith.maximumf %6, %7 : vector<8x16xf32>
    %c0_7 = arith.constant 0 : index
    %c0_8 = arith.constant 0 : index
    %c0_9 = arith.constant 0 : index
    %9 = vector.load %arg5[%c0_7, %c0_8, %c0_9] : memref<1x8x16xf32, #tpu.memory_space<vmem>>, vector<1x8x16xf32>
    %10 = vector.shape_cast %9 : vector<1x8x16xf32> to vector<8x16xf32>
    %11 = vector.shape_cast %8 : vector<8x16xf32> to vector<1x8x16xf32>
    tpu.vector_store %arg5[%c0_7, %c0_8, %c0_9], %11 {strides = array<i32>} : memref<1x8x16xf32, #tpu.memory_space<vmem>>, vector<1x8x16xf32>,
    %cst_10 = arith.constant dense<0.000000e+00> : vector<8xf32>
    %12 = vector.multi_reduction <add>, %8, %cst_10 [1] : vector<8x16xf32> to vector<8xf32>
    %13 = vector.shape_cast %12 : vector<8xf32> to vector<8x1xf32>
    %14 = arith.mulf %8, %8 : vector<8x16xf32>
    %cst_11 = arith.constant dense<0.000000e+00> : vector<8xf32>
    %15 = vector.multi_reduction <add>, %14, %cst_11 [1] : vector<8x16xf32> to vector<8xf32>
    %16 = vector.shape_cast %15 : vector<8xf32> to vector<8x1xf32>
    %17 = tpu.concatenate %13, %16 in 1 : vector<8x1xf32>, vector<8x1xf32> -> vector<8x2xf32>
    %c0_12 = arith.constant 0 : index
    %c0_13 = arith.constant 0 : index
    %c0_14 = arith.constant 0 : index
    %c0_15 = arith.constant 0 : index
    %18 = vector.load %arg6[%c0_12, %c0_13, %c0_14, %c0_15] : memref<1x1x8x2xf32, #tpu.memory_space<vmem>>, vector<1x1x8x2xf32>
    %19 = vector.shape_cast %18 : vector<1x1x8x2xf32> to vector<8x2xf32>
    %20 = vector.shape_cast %17 : vector<8x2xf32> to vector<1x1x8x2xf32>
    tpu.vector_store %arg6[%c0_12, %c0_13, %c0_14, %c0_15], %20 {strides = array<i32>} : memref<1x1x8x2xf32, #tpu.memory_space<vmem>>, vector<1x1x8x2xf32>,
    return
  }
  func.func @transform_0(%arg0: i32, %arg1: i32) -> (i32, i32, i32) {
    %c0_i32 = arith.constant 0 : i32
    %c0_i32_0 = arith.constant 0 : i32
    return %arg0, %c0_i32, %arg1 : i32, i32, i32
  }
  func.func @transform_1(%arg0: i32, %arg1: i32) -> (i32, i32) {
    %c0_i32 = arith.constant 0 : i32
    %c0_i32_0 = arith.constant 0 : i32
    %c0_i32_1 = arith.constant 0 : i32
    return %c0_i32, %c0_i32_0 : i32, i32
  }
  func.func @transform_2(%arg0: i32, %arg1: i32) -> (i32, i32) {
    %c0_i32 = arith.constant 0 : i32
    %c0_i32_0 = arith.constant 0 : i32
    %c0_i32_1 = arith.constant 0 : i32
    return %c0_i32, %c0_i32_0 : i32, i32
  }
  func.func @transform_3(%arg0: i32, %arg1: i32) -> (i32, i32, i32) {
    %c0_i32 = arith.constant 0 : i32
    %c0_i32_0 = arith.constant 0 : i32
    return %arg0, %c0_i32, %arg1 : i32, i32, i32
  }
  func.func @transform_4(%arg0: i32, %arg1: i32) -> (i32, i32, i32, i32) {
    %c0_i32 = arith.constant 0 : i32
    %c0_i32_0 = arith.constant 0 : i32
    %c0_i32_1 = arith.constant 0 : i32
    return %arg0, %arg1, %c0_i32, %c0_i32_0 : i32, i32, i32, i32
  }
}

module attributes {stable_mosaic.version = 11 : i64} {
  func.func @_affine_kernel(%arg0: i32, %arg1: i32, %arg2: memref<1x8x16xf32, #tpu.memory_space<vmem>>, %arg3: memref<8x1xf32, #tpu.memory_space<vmem>>, %arg4: memref<8x1xf32, #tpu.memory_space<vmem>>, %arg5: memref<1x8x16xf32, #tpu.memory_space<vmem>>) attributes {dimension_semantics = [#tpu.dimension_semantics<parallel>, #tpu.dimension_semantics<parallel>], iteration_bounds = array<i64: 2, 1>, scalar_prefetch = 0 : i64, scratch_operands = 0 : i64, tpu.core_type = #tpu.core_type<tc>, window_params = [{transform_indices = @transform_0, window_bounds = array<i64: 1, 8, 16>}, {pipeline_mode = #tpu.pipeline_mode<synchronous>, transform_indices = @transform_1, window_bounds = array<i64: 8, 1>}, {pipeline_mode = #tpu.pipeline_mode<synchronous>, transform_indices = @transform_2, window_bounds = array<i64: 8, 1>}, {transform_indices = @transform_3, window_bounds = array<i64: 1, 8, 16>}]} {
    %c0 = arith.constant 0 : index
    %c0_0 = arith.constant 0 : index
    %c0_1 = arith.constant 0 : index
    %0 = vector.load %arg2[%c0, %c0_0, %c0_1] : memref<1x8x16xf32, #tpu.memory_space<vmem>>, vector<1x8x16xf32>
    %1 = vector.shape_cast %0 : vector<1x8x16xf32> to vector<8x16xf32>
    %c0_2 = arith.constant 0 : index
    %c0_3 = arith.constant 0 : index
    %2 = vector.load %arg3[%c0_2, %c0_3] : memref<8x1xf32, #tpu.memory_space<vmem>>, vector<8x1xf32>
    %3 = vector.broadcast %2 : vector<8x1xf32> to vector<8x16xf32>
    %4 = arith.mulf %1, %3 : vector<8x16xf32>
    %c0_4 = arith.constant 0 : index
    %c0_5 = arith.constant 0 : index
    %5 = vector.load %arg4[%c0_4, %c0_5] : memref<8x1xf32, #tpu.memory_space<vmem>>, vector<8x1xf32>
    %6 = vector.broadcast %5 : vector<8x1xf32> to vector<8x16xf32>
    %7 = arith.addf %4, %6 : vector<8x16xf32>
    %c0_6 = arith.constant 0 : index
    %c0_7 = arith.constant 0 : index
    %c0_8 = arith.constant 0 : index
    %8 = vector.load %arg5[%c0_6, %c0_7, %c0_8] : memref<1x8x16xf32, #tpu.memory_space<vmem>>, vector<1x8x16xf32>
    %9 = vector.shape_cast %8 : vector<1x8x16xf32> to vector<8x16xf32>
    %10 = vector.shape_cast %7 : vector<8x16xf32> to vector<1x8x16xf32>
    tpu.vector_store %arg5[%c0_6, %c0_7, %c0_8], %10 {strides = array<i32>} : memref<1x8x16xf32, #tpu.memory_space<vmem>>, vector<1x8x16xf32>,
    return
  }
  func.func @transform_0(%arg0: i32, %arg1: i32) -> (i32, i32, i32) {
    %c0_i32 = arith.constant 0 : i32
    %c0_i32_0 = arith.constant 0 : i32
    return %arg0, %c0_i32, %arg1 : i32, i32, i32
  }
  func.func @transform_1(%arg0: i32, %arg1: i32) -> (i32, i32) {
    %c0_i32 = arith.constant 0 : i32
    %c0_i32_0 = arith.constant 0 : i32
    %c0_i32_1 = arith.constant 0 : i32
    return %c0_i32, %c0_i32_0 : i32, i32
  }
  func.func @transform_2(%arg0: i32, %arg1: i32) -> (i32, i32) {
    %c0_i32 = arith.constant 0 : i32
    %c0_i32_0 = arith.constant 0 : i32
    %c0_i32_1 = arith.constant 0 : i32
    return %c0_i32, %c0_i32_0 : i32, i32
  }
  func.func @transform_3(%arg0: i32, %arg1: i32) -> (i32, i32, i32) {
    %c0_i32 = arith.constant 0 : i32
    %c0_i32_0 = arith.constant 0 : i32
    return %arg0, %c0_i32, %arg1 : i32, i32, i32
  }
}

</mosaic_0001>

<llo_original>
// kernel: double_conv.5
$region0: #{double_conv.5}
  #allocation0 [shape = 'u32[]', space=smem, size = 0x4, offset = 0x4, fixed_abs, tag = 'smem constant byte address 0x4 - core index']
  #allocation1 [shape = 'u32[144,128]{1,0:T(1,128)}', space=vmem, size = 0x12000, scoped, tag = 'internal scratch']
  %s0 = inlined_call_operand.vmem [shape: f32[2,8,16], index: 0, kind: input, shape index: {}]
  %s1 = inlined_call_operand.vmem [shape: f32[8,1], index: 1, kind: input, shape index: {}]
  %s2 = inlined_call_operand.vmem [shape: f32[8,1], index: 2, kind: input, shape index: {}]
  %s3 = inlined_call_operand.vmem [shape: f32[2,8,16], index: 3, kind: output, shape index: {}]
  %s4 = sld [smem:[#allocation0]]
  $region45: #{double_conv.5} parent=0
    _
  %s6 = ssub.s32 1, %s4
  %s7 = scalar_select 0, %s6, %s4
  loop: start=0, step=1, limit=4
  $region2: #{double_conv.5} parent=0 // loop_pre_header
    _
  $region3: #{double_conv.5} parent=0 // loop_header
    %s9 = sphi 0, %s13
    %p10 = scmp.ge.s32.totalorder %s9, 4
    %s16 = sphi 0, %s28
    %s17 = sphi 0, %s24
    %s18 = sphi 0, %s16
    %s19 = sphi 0, %s17
    %s20 = sphi 0, %s18
    %s21 = sphi 0, %s19
    %s33 = sphi 0, %s35
    %s36 = sphi 0, %s33
    %s37 = sphi 0, %s36
    %s53 = sphi 0, %s37
    %s57 = sphi 0, %s57
    %s59 = sphi 0, %s57
    %s60 = sphi 0, %s59
    %s74 = sphi 0, %s60
    %s78 = sphi 0, %s78
    %s80 = sphi 0, %s78
    %s81 = sphi 0, %s80
    %s95 = sphi 0, %s81
    %s103 = sphi 0, %s105
    %s106 = sphi 0, %s103
    %s107 = sphi 0, %s106
    %s123 = sphi 0, %s107
  $region4: #{double_conv.5} parent=0 // loop_header_branch
    %12 = sbr.rel (%p10) target = $region8
  $region5: #{double_conv.5} parent=0 // loop_body
    %s14 = ssub.s32 %s9, 1
    %s15 = ssub.s32 %s9, 2
    %s22 = sadd.s32 1, %s17
    %p23 = scmp.ge.s32.totalorder %s22, 1
    %s24 = scalar_select %p23, 0, %s22
    %s25 = sadd.s32 1, %s16
    %s26 = scalar_select %p23, %s25, %s16
    %p27 = scmp.ge.s32.totalorder %s26, 2
    %s28 = scalar_select %p27, 0, %s26
    %s29 = ssub.s32 %s16, %s28
    %s30 = ssub.s32 %s17, %s24
    %s31 = sor.u32 %s29, %s30
    %p32 = scmp.eq.s32.totalorder %s31, 0
    %s34 = sadd.s32 %s33, 1
    %s35 = scalar_select %p32, %s33, %s34
    %p38 = pneg %p32
    %p39 = scmp.eq.s32.totalorder %s9, 1
    %p40 = por %p38, %p39
    %p41 = scmp.ne.s32.totalorder %s33, %s36
    %p42 = scmp.eq.s32.totalorder %s9, 0
    %p43 = por %p41, %p42
    %p44 = scmp.ne.s32.totalorder %s33, %s36
    %p45 = scmp.eq.s32.totalorder %s14, 1
    %p46 = por %p44, %p45
    %p47 = scmp.ne.s32.totalorder %s36, %s37
    %p48 = scmp.eq.s32.totalorder %s14, 0
    %p49 = por %p47, %p48
    %p50 = scmp.ne.s32.totalorder %s36, %s37
    %p51 = scmp.eq.s32.totalorder %s15, 1
    %p52 = por %p50, %p51
    %p54 = scmp.ne.s32.totalorder %s37, %s53
    %p55 = scmp.eq.s32.totalorder %s15, 0
    %p56 = por %p54, %p55
    %s58 = sadd.s32 %s57, 1
    %p61 = scmp.eq.s32.totalorder %s9, 1
    %p62 = scmp.ne.s32.totalorder %s57, %s59
    %p63 = scmp.eq.s32.totalorder %s9, 0
    %p64 = por %p62, %p63
    %p65 = scmp.ne.s32.totalorder %s57, %s59
    %p66 = scmp.eq.s32.totalorder %s14, 1
    %p67 = por %p65, %p66
    %p68 = scmp.ne.s32.totalorder %s59, %s60
    %p69 = scmp.eq.s32.totalorder %s14, 0
    %p70 = por %p68, %p69
    %p71 = scmp.ne.s32.totalorder %s59, %s60
    %p72 = scmp.eq.s32.totalorder %s15, 1
    %p73 = por %p71, %p72
    %p75 = scmp.ne.s32.totalorder %s60, %s74
    %p76 = scmp.eq.s32.totalorder %s15, 0
    %p77 = por %p75, %p76
    %s79 = sadd.s32 %s78, 1
    %p82 = scmp.eq.s32.totalorder %s9, 1
    %p83 = scmp.ne.s32.totalorder %s78, %s80
    %p84 = scmp.eq.s32.totalorder %s9, 0
    %p85 = por %p83, %p84
    %p86 = scmp.ne.s32.totalorder %s78, %s80
    %p87 = scmp.eq.s32.totalorder %s14, 1
    %p88 = por %p86, %p87
    %p89 = scmp.ne.s32.totalorder %s80, %s81
    %p90 = scmp.eq.s32.totalorder %s14, 0
    %p91 = por %p89, %p90
    %p92 = scmp.ne.s32.totalorder %s80, %s81
    %p93 = scmp.eq.s32.totalorder %s15, 1
    %p94 = por %p92, %p93
    %p96 = scmp.ne.s32.totalorder %s81, %s95
    %p97 = scmp.eq.s32.totalorder %s15, 0
    %p98 = por %p96, %p97
    %s99 = ssub.s32 %s16, %s28
    %s100 = ssub.s32 %s17, %s24
    %s101 = sor.u32 %s99, %s100
    %p102 = scmp.eq.s32.totalorder %s101, 0
    %s104 = sadd.s32 %s103, 1
    %s105 = scalar_select %p102, %s103, %s104
    %p108 = pneg %p102
    %p109 = scmp.eq.s32.totalorder %s9, 1
    %p110 = por %p108, %p109
    %p111 = scmp.ne.s32.totalorder %s103, %s106
    %p112 = scmp.eq.s32.totalorder %s9, 0
    %p113 = por %p111, %p112
    %p114 = scmp.ne.s32.totalorder %s103, %s106
    %p115 = scmp.eq.s32.totalorder %s14, 1
    %p116 = por %p114, %p115
    %p117 = scmp.ne.s32.totalorder %s106, %s107
    %p118 = scmp.eq.s32.totalorder %s14, 0
    %p119 = por %p117, %p118
    %p120 = scmp.ne.s32.totalorder %s106, %s107
    %p121 = scmp.eq.s32.totalorder %s15, 1
    %p122 = por %p120, %p121
    %p124 = scmp.ne.s32.totalorder %s107, %s123
    %p125 = scmp.eq.s32.totalorder %s15, 0
    %p126 = por %p124, %p125
    %p127 = scmp.le.s32.totalorder 1, %s9
    %p128 = scmp.lt.s32.totalorder %s9, 3
    %p129 = pnand %p127, %p128
    %p130 = pneg %p129
    // Predicated region
    $region9: #{double_conv.5} parent=5 // pred_check
      _
    $region10: #{double_conv.5} parent=5 // pred_check_branch
      %132 = sbr.rel (%p129) target = $region12
    $region11: #{double_conv.5} parent=5 // pred_region
      %s133 = ssub.s32 %s9, 1
      // Predicated region
      $region13: #{double_conv.5} parent=11 // pred_check
        %p134 = pneg %p70
      $region14: #{double_conv.5} parent=11 // pred_check_branch
        %136 = sbr.rel (%p134) target = $region16
      $region15: #{double_conv.5} parent=11 // pred_region
        _
      $region16: #{double_conv.5} parent=11 // pred_fallthru
        _
      // Predicated region
      $region17: #{double_conv.5} parent=11 // pred_check
        %p137 = pneg %p91
      $region18: #{double_conv.5} parent=11 // pred_check_branch
        %139 = sbr.rel (%p137) target = $region20
      $region19: #{double_conv.5} parent=11 // pred_region
        _
      $region20: #{double_conv.5} parent=11 // pred_fallthru
        _
    $region12: #{double_conv.5} parent=5 // pred_fallthru
      _
    %p140 = scmp.lt.s32.totalorder %s9, 2
    // Predicated region
    $region21: #{double_conv.5} parent=5 // pred_check
      %p141 = pneg %p140
    $region22: #{double_conv.5} parent=5 // pred_check_branch
      %143 = sbr.rel (%p141) target = $region24
    $region23: #{double_conv.5} parent=5 // pred_region
      // Predicated region
      $region25: #{double_conv.5} parent=23 // pred_check
        %p144 = pneg %p43
      $region26: #{double_conv.5} parent=23 // pred_check_branch
        %146 = sbr.rel (%p144) target = $region28
      $region27: #{double_conv.5} parent=23 // pred_region
        %p147 = scmp.lt.s32.totalorder %s16, 1
        %s148 = scalar_select %p147, %s16, 1
        %p149 = scmp.lt.s32.totalorder %s17, 0
        %s150 = scalar_select %p149, %s17, 0
        %s151 = sadd.s32 %s150, %s148
        %s152 = smul.addr %s151, 8
        %s153 = scalar_lea.vmem %s0, %s152
      $region28: #{double_conv.5} parent=23 // pred_fallthru
        _
    $region24: #{double_conv.5} parent=5 // pred_fallthru
      _
    %p154 = scmp.le.s32.totalorder 1, %s9
    %p155 = scmp.lt.s32.totalorder %s9, 3
    %p156 = pnand %p154, %p155
    %p157 = pneg %p156
    // Predicated region
    $region29: #{double_conv.5} parent=5 // pred_check
      _
    $region30: #{double_conv.5} parent=5 // pred_check_branch
      %159 = sbr.rel (%p156) target = $region32
    $region31: #{double_conv.5} parent=5 // pred_region
      %s160 = ssub.s32 %s9, 1
      %p161 = scmp.lt.s32.totalorder %s18, 1
      %s162 = scalar_select %p161, %s18, 1
      %p163 = scmp.lt.s32.totalorder %s19, 0
      %s164 = scalar_select %p163, %s19, 0
      %s165 = sadd.s32 %s164, %s162
      %s166 = smul.addr %s165, 8
      %s167 = scalar_lea.vmem %s0, %s166
      %p168 = pneg %p49
      %p169 = pneg %p46
      %p170 = pneg %p70
      %p171 = pneg %p67
      %p172 = pneg %p91
      %p173 = pneg %p88
      %p174 = pneg %p119
      %p175 = pneg %p116
      %p176 = scmp.lt.s32.totalorder %s18, 1
      %s177 = scalar_select %p176, %s18, 1
      %p178 = scmp.lt.s32.totalorder %s19, 0
      %s179 = scalar_select %p178, %s19, 0
      %s180 = sadd.s32 %s179, %s177
      %s181 = smul.addr %s180, 8
      %s182 = scalar_lea.vmem %s3, %s181
      %p183 = scmp.lt.s32.totalorder %s18, 1
      %s184 = scalar_select %p183, %s18, 1
      %p185 = scmp.lt.s32.totalorder %s19, 0
      %s186 = scalar_select %p185, %s19, 0
      %s187 = sadd.s32 %s186, %s184
      %s188 = smul.addr %s187, 8
      %s189 = scalar_lea.vmem %s0, %s188
      %p190 = scmp.lt.s32.totalorder %s18, 1
      %s191 = scalar_select %p190, %s18, 1
      %p192 = scmp.lt.s32.totalorder %s19, 0
      %s193 = scalar_select %p192, %s19, 0
      %s194 = sadd.s32 %s193, %s191
      %s195 = smul.addr %s194, 8
      %s196 = scalar_lea.vmem %s3, %s195
      %v197 = vld [vmem:[%s189] sm:$0xff]
      %v198 = vld [vmem:[%s1] sm:$0xff]
      %200 = vset.pattern.permute.xlu0 0
      %201 = vperm.xlu0 %200, %v198
      %v202 = vpop.permute.xlu0 %201
      %v204 = vmul.f32 %v197, %v202
      %v205 = vld [vmem:[%s2] sm:$0xff]
      %207 = vset.pattern.permute.xlu0 0
      %208 = vperm.xlu0 %207, %v205
      %v209 = vpop.permute.xlu0 %208
      %v211 = vadd.f32 %v204, %v209
      %vm212 = vcmask 130048
      %213 = vst.msk [vmem:[%s196] sm:$0xff] %vm212, %v211
      %p214 = scmp.lt.s32.totalorder %s18, 1
      %s215 = scalar_select %p214, %s18, 1
      %p216 = scmp.lt.s32.totalorder %s19, 0
      %s217 = scalar_select %p216, %s19, 0
      %s218 = sadd.s32 %s217, %s215
      %s219 = smul.addr %s218, 8
      %s220 = scalar_lea.vmem %s3, %s219
      // Predicated region
      $region33: #{double_conv.5} parent=31 // pred_check
        %p221 = pneg %p116
      $region34: #{double_conv.5} parent=31 // pred_check_branch
        %223 = sbr.rel (%p221) target = $region36
      $region35: #{double_conv.5} parent=31 // pred_region
        _
      $region36: #{double_conv.5} parent=31 // pred_fallthru
        _
    $region32: #{double_conv.5} parent=5 // pred_fallthru
      _
    %p224 = scmp.le.s32.totalorder 2, %s9
    // Predicated region
    $region37: #{double_conv.5} parent=5 // pred_check
      %p225 = pneg %p224
    $region38: #{double_conv.5} parent=5 // pred_check_branch
      %227 = sbr.rel (%p225) target = $region40
    $region39: #{double_conv.5} parent=5 // pred_region
      %s228 = ssub.s32 %s9, 2
      // Predicated region
      $region41: #{double_conv.5} parent=39 // pred_check
        %p229 = pneg %p122
      $region42: #{double_conv.5} parent=39 // pred_check_branch
        %231 = sbr.rel (%p229) target = $region44
      $region43: #{double_conv.5} parent=39 // pred_region
        %p232 = scmp.lt.s32.totalorder %s20, 1
        %s233 = scalar_select %p232, %s20, 1
        %p234 = scmp.lt.s32.totalorder %s21, 0
        %s235 = scalar_select %p234, %s21, 0
        %s236 = sadd.s32 %s235, %s233
        %s237 = smul.addr %s236, 8
        %s238 = scalar_lea.vmem %s3, %s237
      $region44: #{double_conv.5} parent=39 // pred_fallthru
        _
    $region40: #{double_conv.5} parent=5 // pred_fallthru
      _
  $region6: #{double_conv.5} parent=0 // loop_footer
    %s13 = sadd.s32 1, %s9
  $region7: #{double_conv.5} parent=0 // loop_footer_branch
    %8 = sbr.rel target = $region3
  $region8: #{double_conv.5} parent=0 // loop_exit
    _

// kernel: double_conv.4
$region0: #{double_conv.4}
  #allocation0 [shape = 'u32[]', space=smem, size = 0x4, offset = 0x4, fixed_abs, tag = 'smem constant byte address 0x4 - core index']
  #allocation1 [shape = 'u32[144,128]{1,0:T(1,128)}', space=vmem, size = 0x12000, scoped, tag = 'internal scratch']
  %s0 = inlined_call_operand.vmem [shape: bf16[2,12,16], index: 0, kind: input, shape index: {}]
  %s1 = inlined_call_operand.vmem [shape: bf16[8,12], index: 1, kind: input, shape index: {}]
  %s2 = inlined_call_operand.vmem [shape: f32[8,1], index: 2, kind: input, shape index: {}]
  %s3 = inlined_call_operand.vmem [shape: f32[2,8,16], index: 3, kind: output, shape index: {0}]
  %s4 = inlined_call_operand.vmem [shape: f32[2,1,8,2], index: 4, kind: output, shape index: {1}]
  %5 = xla_tuple %s3, %s4
  %s6 = sld [smem:[#allocation0]]
  $region53: #{double_conv.4} parent=0
    _
  %s8 = ssub.s32 1, %s6
  %s9 = scalar_select 0, %s8, %s6
  loop: start=0, step=1, limit=4
  $region2: #{double_conv.4} parent=0 // loop_pre_header
    _
  $region3: #{double_conv.4} parent=0 // loop_header
    %s11 = sphi 0, %s15
    %p12 = scmp.ge.s32.totalorder %s11, 4
    %s18 = sphi 0, %s30
    %s19 = sphi 0, %s26
    %s20 = sphi 0, %s18
    %s21 = sphi 0, %s19
    %s22 = sphi 0, %s20
    %s23 = sphi 0, %s21
    %s35 = sphi 0, %s37
    %s38 = sphi 0, %s35
    %s39 = sphi 0, %s38
    %s55 = sphi 0, %s39
    %s59 = sphi 0, %s59
    %s61 = sphi 0, %s59
    %s62 = sphi 0, %s61
    %s76 = sphi 0, %s62
    %s80 = sphi 0, %s80
    %s82 = sphi 0, %s80
    %s83 = sphi 0, %s82
    %s97 = sphi 0, %s83
    %s105 = sphi 0, %s107
    %s108 = sphi 0, %s105
    %s109 = sphi 0, %s108
    %s125 = sphi 0, %s109
    %s133 = sphi 0, %s135
    %s136 = sphi 0, %s133
    %s137 = sphi 0, %s136
    %s153 = sphi 0, %s137
  $region4: #{double_conv.4} parent=0 // loop_header_branch
    %14 = sbr.rel (%p12) target = $region8
  $region5: #{double_conv.4} parent=0 // loop_body
    %s16 = ssub.s32 %s11, 1
    %s17 = ssub.s32 %s11, 2
    %s24 = sadd.s32 1, %s19
    %p25 = scmp.ge.s32.totalorder %s24, 1
    %s26 = scalar_select %p25, 0, %s24
    %s27 = sadd.s32 1, %s18
    %s28 = scalar_select %p25, %s27, %s18
    %p29 = scmp.ge.s32.totalorder %s28, 2
    %s30 = scalar_select %p29, 0, %s28
    %s31 = ssub.s32 %s18, %s30
    %s32 = ssub.s32 %s19, %s26
    %s33 = sor.u32 %s31, %s32
    %p34 = scmp.eq.s32.totalorder %s33, 0
    %s36 = sadd.s32 %s35, 1
    %s37 = scalar_select %p34, %s35, %s36
    %p40 = pneg %p34
    %p41 = scmp.eq.s32.totalorder %s11, 1
    %p42 = por %p40, %p41
    %p43 = scmp.ne.s32.totalorder %s35, %s38
    %p44 = scmp.eq.s32.totalorder %s11, 0
    %p45 = por %p43, %p44
    %p46 = scmp.ne.s32.totalorder %s35, %s38
    %p47 = scmp.eq.s32.totalorder %s16, 1
    %p48 = por %p46, %p47
    %p49 = scmp.ne.s32.totalorder %s38, %s39
    %p50 = scmp.eq.s32.totalorder %s16, 0
    %p51 = por %p49, %p50
    %p52 = scmp.ne.s32.totalorder %s38, %s39
    %p53 = scmp.eq.s32.totalorder %s17, 1
    %p54 = por %p52, %p53
    %p56 = scmp.ne.s32.totalorder %s39, %s55
    %p57 = scmp.eq.s32.totalorder %s17, 0
    %p58 = por %p56, %p57
    %s60 = sadd.s32 %s59, 1
    %p63 = scmp.eq.s32.totalorder %s11, 1
    %p64 = scmp.ne.s32.totalorder %s59, %s61
    %p65 = scmp.eq.s32.totalorder %s11, 0
    %p66 = por %p64, %p65
    %p67 = scmp.ne.s32.totalorder %s59, %s61
    %p68 = scmp.eq.s32.totalorder %s16, 1
    %p69 = por %p67, %p68
    %p70 = scmp.ne.s32.totalorder %s61, %s62
    %p71 = scmp.eq.s32.totalorder %s16, 0
    %p72 = por %p70, %p71
    %p73 = scmp.ne.s32.totalorder %s61, %s62
    %p74 = scmp.eq.s32.totalorder %s17, 1
    %p75 = por %p73, %p74
    %p77 = scmp.ne.s32.totalorder %s62, %s76
    %p78 = scmp.eq.s32.totalorder %s17, 0
    %p79 = por %p77, %p78
    %s81 = sadd.s32 %s80, 1
    %p84 = scmp.eq.s32.totalorder %s11, 1
    %p85 = scmp.ne.s32.totalorder %s80, %s82
    %p86 = scmp.eq.s32.totalorder %s11, 0
    %p87 = por %p85, %p86
    %p88 = scmp.ne.s32.totalorder %s80, %s82
    %p89 = scmp.eq.s32.totalorder %s16, 1
    %p90 = por %p88, %p89
    %p91 = scmp.ne.s32.totalorder %s82, %s83
    %p92 = scmp.eq.s32.totalorder %s16, 0
    %p93 = por %p91, %p92
    %p94 = scmp.ne.s32.totalorder %s82, %s83
    %p95 = scmp.eq.s32.totalorder %s17, 1
    %p96 = por %p94, %p95
    %p98 = scmp.ne.s32.totalorder %s83, %s97
    %p99 = scmp.eq.s32.totalorder %s17, 0
    %p100 = por %p98, %p99
    %s101 = ssub.s32 %s18, %s30
    %s102 = ssub.s32 %s19, %s26
    %s103 = sor.u32 %s101, %s102
    %p104 = scmp.eq.s32.totalorder %s103, 0
    %s106 = sadd.s32 %s105, 1
    %s107 = scalar_select %p104, %s105, %s106
    %p110 = pneg %p104
    %p111 = scmp.eq.s32.totalorder %s11, 1
    %p112 = por %p110, %p111
    %p113 = scmp.ne.s32.totalorder %s105, %s108
    %p114 = scmp.eq.s32.totalorder %s11, 0
    %p115 = por %p113, %p114
    %p116 = scmp.ne.s32.totalorder %s105, %s108
    %p117 = scmp.eq.s32.totalorder %s16, 1
    %p118 = por %p116, %p117
    %p119 = scmp.ne.s32.totalorder %s108, %s109
    %p120 = scmp.eq.s32.totalorder %s16, 0
    %p121 = por %p119, %p120
    %p122 = scmp.ne.s32.totalorder %s108, %s109
    %p123 = scmp.eq.s32.totalorder %s17, 1
    %p124 = por %p122, %p123
    %p126 = scmp.ne.s32.totalorder %s109, %s125
    %p127 = scmp.eq.s32.totalorder %s17, 0
    %p128 = por %p126, %p127
    %s129 = ssub.s32 %s18, %s30
    %s130 = ssub.s32 %s19, %s26
    %s131 = sor.u32 %s129, %s130
    %p132 = scmp.eq.s32.totalorder %s131, 0
    %s134 = sadd.s32 %s133, 1
    %s135 = scalar_select %p132, %s133, %s134
    %p138 = pneg %p132
    %p139 = scmp.eq.s32.totalorder %s11, 1
    %p140 = por %p138, %p139
    %p141 = scmp.ne.s32.totalorder %s133, %s136
    %p142 = scmp.eq.s32.totalorder %s11, 0
    %p143 = por %p141, %p142
    %p144 = scmp.ne.s32.totalorder %s133, %s136
    %p145 = scmp.eq.s32.totalorder %s16, 1
    %p146 = por %p144, %p145
    %p147 = scmp.ne.s32.totalorder %s136, %s137
    %p148 = scmp.eq.s32.totalorder %s16, 0
    %p149 = por %p147, %p148
    %p150 = scmp.ne.s32.totalorder %s136, %s137
    %p151 = scmp.eq.s32.totalorder %s17, 1
    %p152 = por %p150, %p151
    %p154 = scmp.ne.s32.totalorder %s137, %s153
    %p155 = scmp.eq.s32.totalorder %s17, 0
    %p156 = por %p154, %p155
    %p157 = scmp.le.s32.totalorder 1, %s11
    %p158 = scmp.lt.s32.totalorder %s11, 3
    %p159 = pnand %p157, %p158
    %p160 = pneg %p159
    // Predicated region
    $region9: #{double_conv.4} parent=5 // pred_check
      _
    $region10: #{double_conv.4} parent=5 // pred_check_branch
      %162 = sbr.rel (%p159) target = $region12
    $region11: #{double_conv.4} parent=5 // pred_region
      %s163 = ssub.s32 %s11, 1
      // Predicated region
      $region13: #{double_conv.4} parent=11 // pred_check
        %p164 = pneg %p72
      $region14: #{double_conv.4} parent=11 // pred_check_branch
        %166 = sbr.rel (%p164) target = $region16
      $region15: #{double_conv.4} parent=11 // pred_region
        _
      $region16: #{double_conv.4} parent=11 // pred_fallthru
        _
      // Predicated region
      $region17: #{double_conv.4} parent=11 // pred_check
        %p167 = pneg %p93
      $region18: #{double_conv.4} parent=11 // pred_check_branch
        %169 = sbr.rel (%p167) target = $region20
      $region19: #{double_conv.4} parent=11 // pred_region
        _
      $region20: #{double_conv.4} parent=11 // pred_fallthru
        _
    $region12: #{double_conv.4} parent=5 // pred_fallthru
      _
    %p170 = scmp.lt.s32.totalorder %s11, 2
    // Predicated region
    $region21: #{double_conv.4} parent=5 // pred_check
      %p171 = pneg %p170
    $region22: #{double_conv.4} parent=5 // pred_check_branch
      %173 = sbr.rel (%p171) target = $region24
    $region23: #{double_conv.4} parent=5 // pred_region
      // Predicated region
      $region25: #{double_conv.4} parent=23 // pred_check
        %p174 = pneg %p45
      $region26: #{double_conv.4} parent=23 // pred_check_branch
        %176 = sbr.rel (%p174) target = $region28
      $region27: #{double_conv.4} parent=23 // pred_region
        %p177 = scmp.lt.s32.totalorder %s18, 1
        %s178 = scalar_select %p177, %s18, 1
        %p179 = scmp.lt.s32.totalorder %s19, 0
        %s180 = scalar_select %p179, %s19, 0
        %s181 = smul.addr %s178, 2
        %s182 = sadd.s32 %s180, %s181
        %s183 = smul.addr %s182, 4
        %s184 = scalar_lea.vmem %s0, %s183
      $region28: #{double_conv.4} parent=23 // pred_fallthru
        _
    $region24: #{double_conv.4} parent=5 // pred_fallthru
      _
    %p185 = scmp.le.s32.totalorder 1, %s11
    %p186 = scmp.lt.s32.totalorder %s11, 3
    %p187 = pnand %p185, %p186
    %p188 = pneg %p187
    // Predicated region
    $region29: #{double_conv.4} parent=5 // pred_check
      _
    $region30: #{double_conv.4} parent=5 // pred_check_branch
      %190 = sbr.rel (%p187) target = $region32
    $region31: #{double_conv.4} parent=5 // pred_region
      %s191 = ssub.s32 %s11, 1
      %p192 = scmp.lt.s32.totalorder %s20, 1
      %s193 = scalar_select %p192, %s20, 1
      %p194 = scmp.lt.s32.totalorder %s21, 0
      %s195 = scalar_select %p194, %s21, 0
      %s196 = smul.addr %s193, 2
      %s197 = sadd.s32 %s195, %s196
      %s198 = smul.addr %s197, 4
      %s199 = scalar_lea.vmem %s0, %s198
      %p200 = pneg %p51
      %p201 = pneg %p48
      %p202 = pneg %p72
      %p203 = pneg %p69
      %p204 = pneg %p93
      %p205 = pneg %p90
      %p206 = pneg %p121
      %p207 = pneg %p118
      %p208 = scmp.lt.s32.totalorder %s20, 1
      %s209 = scalar_select %p208, %s20, 1
      %p210 = scmp.lt.s32.totalorder %s21, 0
      %s211 = scalar_select %p210, %s21, 0
      %s212 = sadd.s32 %s211, %s209
      %s213 = smul.addr %s212, 8
      %s214 = scalar_lea.vmem %s3, %s213
      %p215 = pneg %p149
      %p216 = pneg %p146
      %p217 = scmp.lt.s32.totalorder %s20, 1
      %s218 = scalar_select %p217, %s20, 1
      %p219 = scmp.lt.s32.totalorder %s21, 0
      %s220 = scalar_select %p219, %s21, 0
      %s221 = sadd.s32 %s220, %s218
      %s222 = smul.addr %s221, 8
      %s223 = scalar_lea.vmem %s4, %s222
      %p224 = scmp.lt.s32.totalorder %s20, 1
      %s225 = scalar_select %p224, %s20, 1
      %p226 = scmp.lt.s32.totalorder %s21, 0
      %s227 = scalar_select %p226, %s21, 0
      %s228 = smul.addr %s225, 2
      %s229 = sadd.s32 %s227, %s228
      %s230 = smul.addr %s229, 4
      %s231 = scalar_lea.vmem %s0, %s230
      %p232 = scmp.lt.s32.totalorder %s20, 1
      %s233 = scalar_select %p232, %s20, 1
      %p234 = scmp.lt.s32.totalorder %s21, 0
      %s235 = scalar_select %p234, %s21, 0
      %s236 = sadd.s32 %s235, %s233
      %s237 = smul.addr %s236, 8
      %s238 = scalar_lea.vmem %s3, %s237
      %p239 = scmp.lt.s32.totalorder %s20, 1
      %s240 = scalar_select %p239, %s20, 1
      %p241 = scmp.lt.s32.totalorder %s21, 0
      %s242 = scalar_select %p241, %s21, 0
      %s243 = sadd.s32 %s242, %s240
      %s244 = smul.addr %s243, 8
      %s245 = scalar_lea.vmem %s4, %s244
      %v247 = vld [vmem:[%s1] sm:$0xf]
      %v248 = vld [vmem:[%s231] sm:$0xf]
      %v249 = vld [vmem:[%s231 + $0x4] sm:$0x3]
      %v250 = vld [vmem:[%s2] sm:$0xff]
      %252 = vset.pattern.permute.xlu0 0
      %253 = vperm.xlu0 %252, %v250
      %v254 = vpop.permute.xlu0 %253
      %v258 = vunpack.c.l.b16 %v248
      %v259 = vunpack.c.l.b16 %v249
      %v260 = vpack.c.b16 %v259, %v258
      %vm261 = vcmask 97280
      %v263 = vsel %vm261, %v247, 0
      %vm265 = vcmask 1045504
      %v267 = vsel %vm265, %v260, 0
      %269 = vmatprep.subr.bf16.mxu0 0
      %270 = vmatpush1.bf16.msra.mxu0 %v267
      %271 = vmatprep.subr.bf16.mxu0 0
      %272 = vmatpush1.bf16.msra.mxu0 0
      %273 = vmatprep.subr.bf16.mxu0 0
      %274 = vmatpush1.bf16.msra.mxu0 0
      %275 = vmatprep.subr.bf16.mxu0 0
      %276 = vmatpush1.bf16.msra.mxu0 0
      %277 = vmatprep.subr.bf16.mxu0 0
      %278 = vmatpush1.bf16.msra.mxu0 0
      %279 = vmatprep.subr.bf16.mxu0 0
      %280 = vmatpush1.bf16.msra.mxu0 0
      %281 = vmatprep.subr.bf16.mxu0 0
      %282 = vmatpush1.bf16.msra.mxu0 0
      %283 = vmatprep.subr.bf16.mxu0 0
      %284 = vmatpush1.bf16.msra.mxu0 0
      %285 = vmatprep.subr.bf16.mxu0 0
      %286 = vmatpush1.bf16.msra.mxu0 0
      %287 = vmatprep.subr.bf16.mxu0 0
      %288 = vmatpush1.bf16.msra.mxu0 0
      %289 = vmatprep.subr.bf16.mxu0 0
      %290 = vmatpush1.bf16.msra.mxu0 0
      %291 = vmatprep.subr.bf16.mxu0 0
      %292 = vmatpush1.bf16.msra.mxu0 0
      %293 = vmatprep.subr.bf16.mxu0 0
      %294 = vmatpush1.bf16.msra.mxu0 0
      %295 = vmatprep.subr.bf16.mxu0 0
      %296 = vmatpush1.bf16.msra.mxu0 0
      %297 = vmatprep.subr.bf16.mxu0 0
      %298 = vmatpush1.bf16.msra.mxu0 0
      %299 = vmatprep.subr.bf16.mxu0 0
      %300 = vmatpush1.bf16.msra.mxu0 0
      %301 = vmatprep.mubr.bf16.mxu0 0
      %302 = vmatmul.mubr.bf16.gmra.mrb[0].mxu0 %v263
      %v303 = vpop.f32.mrb[0].mxu0
      %v304 = vadd.f32 %v254, %v303
      %v305 = vpop.f32.mrb[0].mxu0
      %v306 = vpop.f32.mrb[0].mxu0
      %v307 = vpop.f32.mrb[0].mxu0
      %308 = vdwg.mxu0
      %v309 = vmax.f32 %v304, 0.0
      %vm310 = vcmask 130048
      %311 = vst.msk [vmem:[%s238] sm:$0xff] %vm310, %v309
      %v312 = vsel %vm310, %v309, 0.0
      %313 = vadd.xlane.f32.xlu0 %v312
      %v314 = vpop.xlane.xlu0 %313
      %v315 = vmul.f32 %v309, %v309
      %v316 = vsel %vm310, %v315, 0.0
      %317 = vadd.xlane.f32.xlu0 %v316
      %v318 = vpop.xlane.xlu0 %317
      %vm319 = vcmask 7168
      %v320 = vsel %vm319, %v314, %v318
      %vm321 = vcmask 15360
      %322 = vst.msk [vmem:[%s245] sm:$0xff] %vm321, %v320
      %p323 = scmp.lt.s32.totalorder %s20, 1
      %s324 = scalar_select %p323, %s20, 1
      %p325 = scmp.lt.s32.totalorder %s21, 0
      %s326 = scalar_select %p325, %s21, 0
      %s327 = sadd.s32 %s326, %s324
      %s328 = smul.addr %s327, 8
      %s329 = scalar_lea.vmem %s3, %s328
      %p330 = scmp.lt.s32.totalorder %s20, 1
      %s331 = scalar_select %p330, %s20, 1
      %p332 = scmp.lt.s32.totalorder %s21, 0
      %s333 = scalar_select %p332, %s21, 0
      %s334 = sadd.s32 %s333, %s331
      %s335 = smul.addr %s334, 8
      %s336 = scalar_lea.vmem %s4, %s335
      // Predicated region
      $region33: #{double_conv.4} parent=31 // pred_check
        %p337 = pneg %p118
      $region34: #{double_conv.4} parent=31 // pred_check_branch
        %339 = sbr.rel (%p337) target = $region36
      $region35: #{double_conv.4} parent=31 // pred_region
        _
      $region36: #{double_conv.4} parent=31 // pred_fallthru
        _
      // Predicated region
      $region37: #{double_conv.4} parent=31 // pred_check
        %p340 = pneg %p146
      $region38: #{double_conv.4} parent=31 // pred_check_branch
        %342 = sbr.rel (%p340) target = $region40
      $region39: #{double_conv.4} parent=31 // pred_region
        _
      $region40: #{double_conv.4} parent=31 // pred_fallthru
        _
    $region32: #{double_conv.4} parent=5 // pred_fallthru
      _
    %p343 = scmp.le.s32.totalorder 2, %s11
    // Predicated region
    $region41: #{double_conv.4} parent=5 // pred_check
      %p344 = pneg %p343
    $region42: #{double_conv.4} parent=5 // pred_check_branch
      %346 = sbr.rel (%p344) target = $region44
    $region43: #{double_conv.4} parent=5 // pred_region
      %s347 = ssub.s32 %s11, 2
      // Predicated region
      $region45: #{double_conv.4} parent=43 // pred_check
        %p348 = pneg %p124
      $region46: #{double_conv.4} parent=43 // pred_check_branch
        %350 = sbr.rel (%p348) target = $region48
      $region47: #{double_conv.4} parent=43 // pred_region
        %p351 = scmp.lt.s32.totalorder %s22, 1
        %s352 = scalar_select %p351, %s22, 1
        %p353 = scmp.lt.s32.totalorder %s23, 0
        %s354 = scalar_select %p353, %s23, 0
        %s355 = sadd.s32 %s354, %s352
        %s356 = smul.addr %s355, 8
        %s357 = scalar_lea.vmem %s3, %s356
      $region48: #{double_conv.4} parent=43 // pred_fallthru
        _
      // Predicated region
      $region49: #{double_conv.4} parent=43 // pred_check
        %p358 = pneg %p152
      $region50: #{double_conv.4} parent=43 // pred_check_branch
        %360 = sbr.rel (%p358) target = $region52
      $region51: #{double_conv.4} parent=43 // pred_region
        %p361 = scmp.lt.s32.totalorder %s22, 1
        %s362 = scalar_select %p361, %s22, 1
        %p363 = scmp.lt.s32.totalorder %s23, 0
        %s364 = scalar_select %p363, %s23, 0
        %s365 = sadd.s32 %s364, %s362
        %s366 = smul.addr %s365, 8
        %s367 = scalar_lea.vmem %s4, %s366
      $region52: #{double_conv.4} parent=43 // pred_fallthru
        _
    $region44: #{double_conv.4} parent=5 // pred_fallthru
      _
  $region6: #{double_conv.4} parent=0 // loop_footer
    %s15 = sadd.s32 1, %s11
  $region7: #{double_conv.4} parent=0 // loop_footer_branch
    %10 = sbr.rel target = $region3
  $region8: #{double_conv.4} parent=0 // loop_exit
    _

// kernel: double_conv.7
$region0: #{double_conv.7}
  #allocation0 [shape = 'u32[]', space=smem, size = 0x4, offset = 0x4, fixed_abs, tag = 'smem constant byte address 0x4 - core index']
  #allocation1 [shape = 'u32[144,128]{1,0:T(1,128)}', space=vmem, size = 0x12000, scoped, tag = 'internal scratch']
  %s0 = inlined_call_operand.vmem [shape: f32[2,8,16], index: 0, kind: input, shape index: {}]
  %s1 = inlined_call_operand.vmem [shape: f32[8,1], index: 1, kind: input, shape index: {}]
  %s2 = inlined_call_operand.vmem [shape: f32[8,1], index: 2, kind: input, shape index: {}]
  %s3 = inlined_call_operand.hbm [shape: f32[2,8,16], index: 3, kind: output, shape index: {}]
  %s4 = sld [smem:[#allocation0]]
  $region45: #{double_conv.7} parent=0
    _
  %s6 = ssub.s32 1, %s4
  %s7 = scalar_select 0, %s6, %s4
  $region1: #{double_conv.7} parent=0
    #allocation2 [shape = 'u8[8192]{0}', space=vmem, size = 0x2000, scoped, tag = 'output window, operand 0']
    #allocation3 [shape = 's32[2]{0}', space=sflag, size = 0x8, scoped, tag = 'scoped memory for double_conv.7']
    %8 = vsyncpa [#allocation3], 0
    %s9 = scalar_lea.sflag [#allocation3], 1
    %10 = vsyncpa %s9, 0
    loop: start=0, step=1, limit=4
    $region2: #{double_conv.7} parent=1 // loop_pre_header
      _
    $region3: #{double_conv.7} parent=1 // loop_header
      %s12 = sphi 0, %s16
      %p13 = scmp.ge.s32.totalorder %s12, 4
      %s19 = sphi 0, %s31
      %s20 = sphi 0, %s27
      %s21 = sphi 0, %s19
      %s22 = sphi 0, %s20
      %s23 = sphi 0, %s21
      %s24 = sphi 0, %s22
      %s36 = sphi 0, %s38
      %s39 = sphi 0, %s36
      %s40 = sphi 0, %s39
      %s56 = sphi 0, %s40
      %s60 = sphi 0, %s60
      %s62 = sphi 0, %s60
      %s63 = sphi 0, %s62
      %s77 = sphi 0, %s63
      %s81 = sphi 0, %s81
      %s83 = sphi 0, %s81
      %s84 = sphi 0, %s83
      %s98 = sphi 0, %s84
      %s106 = sphi 0, %s108
      %s109 = sphi 0, %s106
      %s110 = sphi 0, %s109
      %s126 = sphi 0, %s110
    $region4: #{double_conv.7} parent=1 // loop_header_branch
      %15 = sbr.rel (%p13) target = $region8
    $region5: #{double_conv.7} parent=1 // loop_body
      %s17 = ssub.s32 %s12, 1
      %s18 = ssub.s32 %s12, 2
      %s25 = sadd.s32 1, %s20
      %p26 = scmp.ge.s32.totalorder %s25, 1
      %s27 = scalar_select %p26, 0, %s25
      %s28 = sadd.s32 1, %s19
      %s29 = scalar_select %p26, %s28, %s19
      %p30 = scmp.ge.s32.totalorder %s29, 2
      %s31 = scalar_select %p30, 0, %s29
      %s32 = ssub.s32 %s19, %s31
      %s33 = ssub.s32 %s20, %s27
      %s34 = sor.u32 %s32, %s33
      %p35 = scmp.eq.s32.totalorder %s34, 0
      %s37 = sadd.s32 %s36, 1
      %s38 = scalar_select %p35, %s36, %s37
      %p41 = pneg %p35
      %p42 = scmp.eq.s32.totalorder %s12, 1
      %p43 = por %p41, %p42
      %p44 = scmp.ne.s32.totalorder %s36, %s39
      %p45 = scmp.eq.s32.totalorder %s12, 0
      %p46 = por %p44, %p45
      %p47 = scmp.ne.s32.totalorder %s36, %s39
      %p48 = scmp.eq.s32.totalorder %s17, 1
      %p49 = por %p47, %p48
      %p50 = scmp.ne.s32.totalorder %s39, %s40
      %p51 = scmp.eq.s32.totalorder %s17, 0
      %p52 = por %p50, %p51
      %p53 = scmp.ne.s32.totalorder %s39, %s40
      %p54 = scmp.eq.s32.totalorder %s18, 1
      %p55 = por %p53, %p54
      %p57 = scmp.ne.s32.totalorder %s40, %s56
      %p58 = scmp.eq.s32.totalorder %s18, 0
      %p59 = por %p57, %p58
      %s61 = sadd.s32 %s60, 1
      %p64 = scmp.eq.s32.totalorder %s12, 1
      %p65 = scmp.ne.s32.totalorder %s60, %s62
      %p66 = scmp.eq.s32.totalorder %s12, 0
      %p67 = por %p65, %p66
      %p68 = scmp.ne.s32.totalorder %s60, %s62
      %p69 = scmp.eq.s32.totalorder %s17, 1
      %p70 = por %p68, %p69
      %p71 = scmp.ne.s32.totalorder %s62, %s63
      %p72 = scmp.eq.s32.totalorder %s17, 0
      %p73 = por %p71, %p72
      %p74 = scmp.ne.s32.totalorder %s62, %s63
      %p75 = scmp.eq.s32.totalorder %s18, 1
      %p76 = por %p74, %p75
      %p78 = scmp.ne.s32.totalorder %s63, %s77
      %p79 = scmp.eq.s32.totalorder %s18, 0
      %p80 = por %p78, %p79
      %s82 = sadd.s32 %s81, 1
      %p85 = scmp.eq.s32.totalorder %s12, 1
      %p86 = scmp.ne.s32.totalorder %s81, %s83
      %p87 = scmp.eq.s32.totalorder %s12, 0
      %p88 = por %p86, %p87
      %p89 = scmp.ne.s32.totalorder %s81, %s83
      %p90 = scmp.eq.s32.totalorder %s17, 1
      %p91 = por %p89, %p90
      %p92 = scmp.ne.s32.totalorder %s83, %s84
      %p93 = scmp.eq.s32.totalorder %s17, 0
      %p94 = por %p92, %p93
      %p95 = scmp.ne.s32.totalorder %s83, %s84
      %p96 = scmp.eq.s32.totalorder %s18, 1
      %p97 = por %p95, %p96
      %p99 = scmp.ne.s32.totalorder %s84, %s98
      %p100 = scmp.eq.s32.totalorder %s18, 0
      %p101 = por %p99, %p100
      %s102 = ssub.s32 %s19, %s31
      %s103 = ssub.s32 %s20, %s27
      %s104 = sor.u32 %s102, %s103
      %p105 = scmp.eq.s32.totalorder %s104, 0
      %s107 = sadd.s32 %s106, 1
      %s108 = scalar_select %p105, %s106, %s107
      %p111 = pneg %p105
      %p112 = scmp.eq.s32.totalorder %s12, 1
      %p113 = por %p111, %p112
      %p114 = scmp.ne.s32.totalorder %s106, %s109
      %p115 = scmp.eq.s32.totalorder %s12, 0
      %p116 = por %p114, %p115
      %p117 = scmp.ne.s32.totalorder %s106, %s109
      %p118 = scmp.eq.s32.totalorder %s17, 1
      %p119 = por %p117, %p118
      %p120 = scmp.ne.s32.totalorder %s109, %s110
      %p121 = scmp.eq.s32.totalorder %s17, 0
      %p122 = por %p120, %p121
      %p123 = scmp.ne.s32.totalorder %s109, %s110
      %p124 = scmp.eq.s32.totalorder %s18, 1
      %p125 = por %p123, %p124
      %p127 = scmp.ne.s32.totalorder %s110, %s126
      %p128 = scmp.eq.s32.totalorder %s18, 0
      %p129 = por %p127, %p128
      %p130 = scmp.le.s32.totalorder 1, %s12
      %p131 = scmp.lt.s32.totalorder %s12, 3
      %p132 = pnand %p130, %p131
      %p133 = pneg %p132
      // Predicated region
      $region9: #{double_conv.7} parent=5 // pred_check
        _
      $region10: #{double_conv.7} parent=5 // pred_check_branch
        %135 = sbr.rel (%p132) target = $region12
      $region11: #{double_conv.7} parent=5 // pred_region
        %s136 = ssub.s32 %s12, 1
        // Predicated region
        $region13: #{double_conv.7} parent=11 // pred_check
          %p137 = pneg %p73
        $region14: #{double_conv.7} parent=11 // pred_check_branch
          %139 = sbr.rel (%p137) target = $region16
        $region15: #{double_conv.7} parent=11 // pred_region
          _
        $region16: #{double_conv.7} parent=11 // pred_fallthru
          _
        // Predicated region
        $region17: #{double_conv.7} parent=11 // pred_check
          %p140 = pneg %p94
        $region18: #{double_conv.7} parent=11 // pred_check_branch
          %142 = sbr.rel (%p140) target = $region20
        $region19: #{double_conv.7} parent=11 // pred_region
          _
        $region20: #{double_conv.7} parent=11 // pred_fallthru
          _
      $region12: #{double_conv.7} parent=5 // pred_fallthru
        _
      %p143 = scmp.lt.s32.totalorder %s12, 2
      // Predicated region
      $region21: #{double_conv.7} parent=5 // pred_check
        %p144 = pneg %p143
      $region22: #{double_conv.7} parent=5 // pred_check_branch
        %146 = sbr.rel (%p144) target = $region24
      $region23: #{double_conv.7} parent=5 // pred_region
        // Predicated region
        $region25: #{double_conv.7} parent=23 // pred_check
          %p147 = pneg %p46
        $region26: #{double_conv.7} parent=23 // pred_check_branch
          %149 = sbr.rel (%p147) target = $region28
        $region27: #{double_conv.7} parent=23 // pred_region
          %p150 = scmp.lt.s32.totalorder %s19, 1
          %s151 = scalar_select %p150, %s19, 1
          %p152 = scmp.lt.s32.totalorder %s20, 0
          %s153 = scalar_select %p152, %s20, 0
          %s154 = sadd.s32 %s153, %s151
          %s155 = smul.addr %s154, 8
          %s156 = scalar_lea.vmem %s0, %s155
        $region28: #{double_conv.7} parent=23 // pred_fallthru
          _
      $region24: #{double_conv.7} parent=5 // pred_fallthru
        _
      %p157 = scmp.le.s32.totalorder 1, %s12
      %p158 = scmp.lt.s32.totalorder %s12, 3
      %p159 = pnand %p157, %p158
      %p160 = pneg %p159
      // Predicated region
      $region29: #{double_conv.7} parent=5 // pred_check
        _
      $region30: #{double_conv.7} parent=5 // pred_check_branch
        %162 = sbr.rel (%p159) target = $region32
      $region31: #{double_conv.7} parent=5 // pred_region
        %s163 = ssub.s32 %s12, 1
        %p164 = scmp.lt.s32.totalorder %s21, 1
        %s165 = scalar_select %p164, %s21, 1
        %p166 = scmp.lt.s32.totalorder %s22, 0
        %s167 = scalar_select %p166, %s22, 0
        %s168 = sadd.s32 %s167, %s165
        %s169 = smul.addr %s168, 8
        %s170 = scalar_lea.vmem %s0, %s169
        %p171 = pneg %p52
        %p172 = pneg %p49
        %p173 = pneg %p73
        %p174 = pneg %p70
        %p175 = pneg %p94
        %p176 = pneg %p91
        %p177 = pneg %p122
        %p178 = pneg %p119
        %s179 = sand.u32 %s109, 1
        %s180 = scalar_lea.sflag [#allocation3], %s179
        %s181 = sand.u32 %s109, 1
        %s182 = smul.addr %s181, 8
        %s183 = scalar_lea.vmem [#allocation2], %s182
        %p184 = scmp.lt.s32.totalorder %s21, 1
        %s185 = scalar_select %p184, %s21, 1
        %p186 = scmp.lt.s32.totalorder %s22, 0
        %s187 = scalar_select %p186, %s22, 0
        %s188 = sadd.s32 %s187, %s185
        %s189 = smul.addr %s188, 8
        %s190 = scalar_lea.vmem %s0, %s189
        %v191 = vld [vmem:[%s190] sm:$0xff]
        %v192 = vld [vmem:[%s1] sm:$0xff]
        %194 = vset.pattern.permute.xlu0 0
        %195 = vperm.xlu0 %194, %v192
        %v196 = vpop.permute.xlu0 %195
        %v198 = vmul.f32 %v191, %v196
        %v199 = vld [vmem:[%s2] sm:$0xff]
        %201 = vset.pattern.permute.xlu0 0
        %202 = vperm.xlu0 %201, %v199
        %v203 = vpop.permute.xlu0 %202
        %v205 = vadd.f32 %v198, %v203
        %vm206 = vcmask 130048
        %207 = vst.msk [vmem:[%s183] sm:$0xff] %vm206, %v205
        %s208 = sand.u32 %s109, 1
        %s209 = scalar_lea.sflag [#allocation3], %s208
        %s210 = sand.u32 %s109, 1
        %s211 = smul.addr %s210, 8
        %s212 = scalar_lea.vmem [#allocation2], %s211
        // Predicated region
        $region33: #{double_conv.7} parent=31 // pred_check
          %p213 = pneg %p119
        $region34: #{double_conv.7} parent=31 // pred_check_branch
          %215 = sbr.rel (%p213) target = $region36
        $region35: #{double_conv.7} parent=31 // pred_region
          %s217 = ssub.s32 128, 128
          %218 = vsyncadd %s209, %s217
          %s219 = sadd.s32 %s22, %s21
          %s220 = smul.addr %s219, 128
          %s221 = scalar_lea.hbm %s3, %s220
          %s223 = sshll.u32 %s212, 4
          %s224 = int_to_ptr.vmem [resolvable:$true] %s223
          %226 = dma.vmem_to_hbm [thread:$0]  %s224, 128, %s221, %s209
        $region36: #{double_conv.7} parent=31 // pred_fallthru
          _
      $region32: #{double_conv.7} parent=5 // pred_fallthru
        _
      %p227 = scmp.le.s32.totalorder 2, %s12
      // Predicated region
      $region37: #{double_conv.7} parent=5 // pred_check
        %p228 = pneg %p227
      $region38: #{double_conv.7} parent=5 // pred_check_branch
        %230 = sbr.rel (%p228) target = $region40
      $region39: #{double_conv.7} parent=5 // pred_region
        %s231 = ssub.s32 %s12, 2
        // Predicated region
        $region41: #{double_conv.7} parent=39 // pred_check
          %p232 = pneg %p125
        $region42: #{double_conv.7} parent=39 // pred_check_branch
          %234 = sbr.rel (%p232) target = $region44
        $region43: #{double_conv.7} parent=39 // pred_region
          %s235 = sand.u32 %s110, 1
          %s236 = scalar_lea.sflag [#allocation3], %s235
          %s237 = sand.u32 %s110, 1
          %s238 = smul.addr %s237, 8
          %s239 = scalar_lea.vmem [#allocation2], %s238
          %240 = dma.done %s236, 128
        $region44: #{double_conv.7} parent=39 // pred_fallthru
          _
      $region40: #{double_conv.7} parent=5 // pred_fallthru
        _
    $region6: #{double_conv.7} parent=1 // loop_footer
      %s16 = sadd.s32 1, %s12
    $region7: #{double_conv.7} parent=1 // loop_footer_branch
      %11 = sbr.rel target = $region3
    $region8: #{double_conv.7} parent=1 // loop_exit
      _
    %241 = vsyncpa [#allocation3], 1
    %s242 = scalar_lea.sflag [#allocation3], 1
    %243 = vsyncpa %s242, 1

// kernel: double_conv.6
$region0: #{double_conv.6}
  #allocation0 [shape = 'u32[]', space=smem, size = 0x4, offset = 0x4, fixed_abs, tag = 'smem constant byte address 0x4 - core index']
  #allocation1 [shape = 'u32[144,128]{1,0:T(1,128)}', space=vmem, size = 0x12000, scoped, tag = 'internal scratch']
  %s0 = inlined_call_operand.vmem [shape: bf16[2,24,16], index: 0, kind: input, shape index: {}]
  %s1 = inlined_call_operand.vmem [shape: bf16[8,24], index: 1, kind: input, shape index: {}]
  %s2 = inlined_call_operand.vmem [shape: f32[8,1], index: 2, kind: input, shape index: {}]
  %s3 = inlined_call_operand.vmem [shape: f32[2,8,16], index: 3, kind: output, shape index: {0}]
  %s4 = inlined_call_operand.vmem [shape: f32[2,1,8,2], index: 4, kind: output, shape index: {1}]
  %5 = xla_tuple %s3, %s4
  %s6 = sld [smem:[#allocation0]]
  $region53: #{double_conv.6} parent=0
    _
  %s8 = ssub.s32 1, %s6
  %s9 = scalar_select 0, %s8, %s6
  loop: start=0, step=1, limit=4
  $region2: #{double_conv.6} parent=0 // loop_pre_header
    _
  $region3: #{double_conv.6} parent=0 // loop_header
    %s11 = sphi 0, %s15
    %p12 = scmp.ge.s32.totalorder %s11, 4
    %s18 = sphi 0, %s30
    %s19 = sphi 0, %s26
    %s20 = sphi 0, %s18
    %s21 = sphi 0, %s19
    %s22 = sphi 0, %s20
    %s23 = sphi 0, %s21
    %s35 = sphi 0, %s37
    %s38 = sphi 0, %s35
    %s39 = sphi 0, %s38
    %s55 = sphi 0, %s39
    %s59 = sphi 0, %s59
    %s61 = sphi 0, %s59
    %s62 = sphi 0, %s61
    %s76 = sphi 0, %s62
    %s80 = sphi 0, %s80
    %s82 = sphi 0, %s80
    %s83 = sphi 0, %s82
    %s97 = sphi 0, %s83
    %s105 = sphi 0, %s107
    %s108 = sphi 0, %s105
    %s109 = sphi 0, %s108
    %s125 = sphi 0, %s109
    %s133 = sphi 0, %s135
    %s136 = sphi 0, %s133
    %s137 = sphi 0, %s136
    %s153 = sphi 0, %s137
  $region4: #{double_conv.6} parent=0 // loop_header_branch
    %14 = sbr.rel (%p12) target = $region8
  $region5: #{double_conv.6} parent=0 // loop_body
    %s16 = ssub.s32 %s11, 1
    %s17 = ssub.s32 %s11, 2
    %s24 = sadd.s32 1, %s19
    %p25 = scmp.ge.s32.totalorder %s24, 1
    %s26 = scalar_select %p25, 0, %s24
    %s27 = sadd.s32 1, %s18
    %s28 = scalar_select %p25, %s27, %s18
    %p29 = scmp.ge.s32.totalorder %s28, 2
    %s30 = scalar_select %p29, 0, %s28
    %s31 = ssub.s32 %s18, %s30
    %s32 = ssub.s32 %s19, %s26
    %s33 = sor.u32 %s31, %s32
    %p34 = scmp.eq.s32.totalorder %s33, 0
    %s36 = sadd.s32 %s35, 1
    %s37 = scalar_select %p34, %s35, %s36
    %p40 = pneg %p34
    %p41 = scmp.eq.s32.totalorder %s11, 1
    %p42 = por %p40, %p41
    %p43 = scmp.ne.s32.totalorder %s35, %s38
    %p44 = scmp.eq.s32.totalorder %s11, 0
    %p45 = por %p43, %p44
    %p46 = scmp.ne.s32.totalorder %s35, %s38
    %p47 = scmp.eq.s32.totalorder %s16, 1
    %p48 = por %p46, %p47
    %p49 = scmp.ne.s32.totalorder %s38, %s39
    %p50 = scmp.eq.s32.totalorder %s16, 0
    %p51 = por %p49, %p50
    %p52 = scmp.ne.s32.totalorder %s38, %s39
    %p53 = scmp.eq.s32.totalorder %s17, 1
    %p54 = por %p52, %p53
    %p56 = scmp.ne.s32.totalorder %s39, %s55
    %p57 = scmp.eq.s32.totalorder %s17, 0
    %p58 = por %p56, %p57
    %s60 = sadd.s32 %s59, 1
    %p63 = scmp.eq.s32.totalorder %s11, 1
    %p64 = scmp.ne.s32.totalorder %s59, %s61
    %p65 = scmp.eq.s32.totalorder %s11, 0
    %p66 = por %p64, %p65
    %p67 = scmp.ne.s32.totalorder %s59, %s61
    %p68 = scmp.eq.s32.totalorder %s16, 1
    %p69 = por %p67, %p68
    %p70 = scmp.ne.s32.totalorder %s61, %s62
    %p71 = scmp.eq.s32.totalorder %s16, 0
    %p72 = por %p70, %p71
    %p73 = scmp.ne.s32.totalorder %s61, %s62
    %p74 = scmp.eq.s32.totalorder %s17, 1
    %p75 = por %p73, %p74
    %p77 = scmp.ne.s32.totalorder %s62, %s76
    %p78 = scmp.eq.s32.totalorder %s17, 0
    %p79 = por %p77, %p78
    %s81 = sadd.s32 %s80, 1
    %p84 = scmp.eq.s32.totalorder %s11, 1
    %p85 = scmp.ne.s32.totalorder %s80, %s82
    %p86 = scmp.eq.s32.totalorder %s11, 0
    %p87 = por %p85, %p86
    %p88 = scmp.ne.s32.totalorder %s80, %s82
    %p89 = scmp.eq.s32.totalorder %s16, 1
    %p90 = por %p88, %p89
    %p91 = scmp.ne.s32.totalorder %s82, %s83
    %p92 = scmp.eq.s32.totalorder %s16, 0
    %p93 = por %p91, %p92
    %p94 = scmp.ne.s32.totalorder %s82, %s83
    %p95 = scmp.eq.s32.totalorder %s17, 1
    %p96 = por %p94, %p95
    %p98 = scmp.ne.s32.totalorder %s83, %s97
    %p99 = scmp.eq.s32.totalorder %s17, 0
    %p100 = por %p98, %p99
    %s101 = ssub.s32 %s18, %s30
    %s102 = ssub.s32 %s19, %s26
    %s103 = sor.u32 %s101, %s102
    %p104 = scmp.eq.s32.totalorder %s103, 0
    %s106 = sadd.s32 %s105, 1
    %s107 = scalar_select %p104, %s105, %s106
    %p110 = pneg %p104
    %p111 = scmp.eq.s32.totalorder %s11, 1
    %p112 = por %p110, %p111
    %p113 = scmp.ne.s32.totalorder %s105, %s108
    %p114 = scmp.eq.s32.totalorder %s11, 0
    %p115 = por %p113, %p114
    %p116 = scmp.ne.s32.totalorder %s105, %s108
    %p117 = scmp.eq.s32.totalorder %s16, 1
    %p118 = por %p116, %p117
    %p119 = scmp.ne.s32.totalorder %s108, %s109
    %p120 = scmp.eq.s32.totalorder %s16, 0
    %p121 = por %p119, %p120
    %p122 = scmp.ne.s32.totalorder %s108, %s109
    %p123 = scmp.eq.s32.totalorder %s17, 1
    %p124 = por %p122, %p123
    %p126 = scmp.ne.s32.totalorder %s109, %s125
    %p127 = scmp.eq.s32.totalorder %s17, 0
    %p128 = por %p126, %p127
    %s129 = ssub.s32 %s18, %s30
    %s130 = ssub.s32 %s19, %s26
    %s131 = sor.u32 %s129, %s130
    %p132 = scmp.eq.s32.totalorder %s131, 0
    %s134 = sadd.s32 %s133, 1
    %s135 = scalar_select %p132, %s133, %s134
    %p138 = pneg %p132
    %p139 = scmp.eq.s32.totalorder %s11, 1
    %p140 = por %p138, %p139
    %p141 = scmp.ne.s32.totalorder %s133, %s136
    %p142 = scmp.eq.s32.totalorder %s11, 0
    %p143 = por %p141, %p142
    %p144 = scmp.ne.s32.totalorder %s133, %s136
    %p145 = scmp.eq.s32.totalorder %s16, 1
    %p146 = por %p144, %p145
    %p147 = scmp.ne.s32.totalorder %s136, %s137
    %p148 = scmp.eq.s32.totalorder %s16, 0
    %p149 = por %p147, %p148
    %p150 = scmp.ne.s32.totalorder %s136, %s137
    %p151 = scmp.eq.s32.totalorder %s17, 1
    %p152 = por %p150, %p151
    %p154 = scmp.ne.s32.totalorder %s137, %s153
    %p155 = scmp.eq.s32.totalorder %s17, 0
    %p156 = por %p154, %p155
    %p157 = scmp.le.s32.totalorder 1, %s11
    %p158 = scmp.lt.s32.totalorder %s11, 3
    %p159 = pnand %p157, %p158
    %p160 = pneg %p159
    // Predicated region
    $region9: #{double_conv.6} parent=5 // pred_check
      _
    $region10: #{double_conv.6} parent=5 // pred_check_branch
      %162 = sbr.rel (%p159) target = $region12
    $region11: #{double_conv.6} parent=5 // pred_region
      %s163 = ssub.s32 %s11, 1
      // Predicated region
      $region13: #{double_conv.6} parent=11 // pred_check
        %p164 = pneg %p72
      $region14: #{double_conv.6} parent=11 // pred_check_branch
        %166 = sbr.rel (%p164) target = $region16
      $region15: #{double_conv.6} parent=11 // pred_region
        _
      $region16: #{double_conv.6} parent=11 // pred_fallthru
        _
      // Predicated region
      $region17: #{double_conv.6} parent=11 // pred_check
        %p167 = pneg %p93
      $region18: #{double_conv.6} parent=11 // pred_check_branch
        %169 = sbr.rel (%p167) target = $region20
      $region19: #{double_conv.6} parent=11 // pred_region
        _
      $region20: #{double_conv.6} parent=11 // pred_fallthru
        _
    $region12: #{double_conv.6} parent=5 // pred_fallthru
      _
    %p170 = scmp.lt.s32.totalorder %s11, 2
    // Predicated region
    $region21: #{double_conv.6} parent=5 // pred_check
      %p171 = pneg %p170
    $region22: #{double_conv.6} parent=5 // pred_check_branch
      %173 = sbr.rel (%p171) target = $region24
    $region23: #{double_conv.6} parent=5 // pred_region
      // Predicated region
      $region25: #{double_conv.6} parent=23 // pred_check
        %p174 = pneg %p45
      $region26: #{double_conv.6} parent=23 // pred_check_branch
        %176 = sbr.rel (%p174) target = $region28
      $region27: #{double_conv.6} parent=23 // pred_region
        %p177 = scmp.lt.s32.totalorder %s18, 1
        %s178 = scalar_select %p177, %s18, 1
        %p179 = scmp.lt.s32.totalorder %s19, 0
        %s180 = scalar_select %p179, %s19, 0
        %s181 = smul.addr %s178, 3
        %s182 = sadd.s32 %s180, %s181
        %s183 = smul.addr %s182, 4
        %s184 = scalar_lea.vmem %s0, %s183
      $region28: #{double_conv.6} parent=23 // pred_fallthru
        _
    $region24: #{double_conv.6} parent=5 // pred_fallthru
      _
    %p185 = scmp.le.s32.totalorder 1, %s11
    %p186 = scmp.lt.s32.totalorder %s11, 3
    %p187 = pnand %p185, %p186
    %p188 = pneg %p187
    // Predicated region
    $region29: #{double_conv.6} parent=5 // pred_check
      _
    $region30: #{double_conv.6} parent=5 // pred_check_branch
      %190 = sbr.rel (%p187) target = $region32
    $region31: #{double_conv.6} parent=5 // pred_region
      %s191 = ssub.s32 %s11, 1
      %p192 = scmp.lt.s32.totalorder %s20, 1
      %s193 = scalar_select %p192, %s20, 1
      %p194 = scmp.lt.s32.totalorder %s21, 0
      %s195 = scalar_select %p194, %s21, 0
      %s196 = smul.addr %s193, 3
      %s197 = sadd.s32 %s195, %s196
      %s198 = smul.addr %s197, 4
      %s199 = scalar_lea.vmem %s0, %s198
      %p200 = pneg %p51
      %p201 = pneg %p48
      %p202 = pneg %p72
      %p203 = pneg %p69
      %p204 = pneg %p93
      %p205 = pneg %p90
      %p206 = pneg %p121
      %p207 = pneg %p118
      %p208 = scmp.lt.s32.totalorder %s20, 1
      %s209 = scalar_select %p208, %s20, 1
      %p210 = scmp.lt.s32.totalorder %s21, 0
      %s211 = scalar_select %p210, %s21, 0
      %s212 = sadd.s32 %s211, %s209
      %s213 = smul.addr %s212, 8
      %s214 = scalar_lea.vmem %s3, %s213
      %p215 = pneg %p149
      %p216 = pneg %p146
      %p217 = scmp.lt.s32.totalorder %s20, 1
      %s218 = scalar_select %p217, %s20, 1
      %p219 = scmp.lt.s32.totalorder %s21, 0
      %s220 = scalar_select %p219, %s21, 0
      %s221 = sadd.s32 %s220, %s218
      %s222 = smul.addr %s221, 8
      %s223 = scalar_lea.vmem %s4, %s222
      %p224 = scmp.lt.s32.totalorder %s20, 1
      %s225 = scalar_select %p224, %s20, 1
      %p226 = scmp.lt.s32.totalorder %s21, 0
      %s227 = scalar_select %p226, %s21, 0
      %s228 = smul.addr %s225, 3
      %s229 = sadd.s32 %s227, %s228
      %s230 = smul.addr %s229, 4
      %s231 = scalar_lea.vmem %s0, %s230
      %p232 = scmp.lt.s32.totalorder %s20, 1
      %s233 = scalar_select %p232, %s20, 1
      %p234 = scmp.lt.s32.totalorder %s21, 0
      %s235 = scalar_select %p234, %s21, 0
      %s236 = sadd.s32 %s235, %s233
      %s237 = smul.addr %s236, 8
      %s238 = scalar_lea.vmem %s3, %s237
      %p239 = scmp.lt.s32.totalorder %s20, 1
      %s240 = scalar_select %p239, %s20, 1
      %p241 = scmp.lt.s32.totalorder %s21, 0
      %s242 = scalar_select %p241, %s21, 0
      %s243 = sadd.s32 %s242, %s240
      %s244 = smul.addr %s243, 8
      %s245 = scalar_lea.vmem %s4, %s244
      %v247 = vld [vmem:[%s1] sm:$0xf]
      %v248 = vld [vmem:[%s231] sm:$0xf]
      %v249 = vld [vmem:[%s231 + $0x4] sm:$0xf]
      %v250 = vld [vmem:[%s231 + $0x8] sm:$0xf]
      %v251 = vld [vmem:[%s2] sm:$0xff]
      %253 = vset.pattern.permute.xlu0 0
      %254 = vperm.xlu0 %253, %v251
      %v255 = vpop.permute.xlu0 %254
      %v260 = vunpack.c.l.b16 %v248
      %v261 = vunpack.c.l.b16 %v249
      %v262 = vunpack.c.l.b16 %v250
      %v263 = vpack.c.b16 %v261, %v260
      %v264 = vpack.c.b16 %v262, %v262
      %vm266 = vcmask 195584
      %v268 = vsel %vm266, %v247, 0
      %vm270 = vcmask 1043456
      %v272 = vsel %vm270, %v264, 0
      %274 = vmatprep.subr.bf16.mxu0 0
      %275 = vmatpush1.bf16.msra.mxu0 %v263
      %276 = vmatprep.subr.bf16.mxu0 0
      %277 = vmatpush1.bf16.msra.mxu0 %v272
      %278 = vmatprep.subr.bf16.mxu0 0
      %279 = vmatpush1.bf16.msra.mxu0 0
      %280 = vmatprep.subr.bf16.mxu0 0
      %281 = vmatpush1.bf16.msra.mxu0 0
      %282 = vmatprep.subr.bf16.mxu0 0
      %283 = vmatpush1.bf16.msra.mxu0 0
      %284 = vmatprep.subr.bf16.mxu0 0
      %285 = vmatpush1.bf16.msra.mxu0 0
      %286 = vmatprep.subr.bf16.mxu0 0
      %287 = vmatpush1.bf16.msra.mxu0 0
      %288 = vmatprep.subr.bf16.mxu0 0
      %289 = vmatpush1.bf16.msra.mxu0 0
      %290 = vmatprep.subr.bf16.mxu0 0
      %291 = vmatpush1.bf16.msra.mxu0 0
      %292 = vmatprep.subr.bf16.mxu0 0
      %293 = vmatpush1.bf16.msra.mxu0 0
      %294 = vmatprep.subr.bf16.mxu0 0
      %295 = vmatpush1.bf16.msra.mxu0 0
      %296 = vmatprep.subr.bf16.mxu0 0
      %297 = vmatpush1.bf16.msra.mxu0 0
      %298 = vmatprep.subr.bf16.mxu0 0
      %299 = vmatpush1.bf16.msra.mxu0 0
      %300 = vmatprep.subr.bf16.mxu0 0
      %301 = vmatpush1.bf16.msra.mxu0 0
      %302 = vmatprep.subr.bf16.mxu0 0
      %303 = vmatpush1.bf16.msra.mxu0 0
      %304 = vmatprep.subr.bf16.mxu0 0
      %305 = vmatpush1.bf16.msra.mxu0 0
      %306 = vmatprep.mubr.bf16.mxu0 0
      %307 = vmatmul.mubr.bf16.gmra.mrb[0].mxu0 %v268
      %v308 = vpop.f32.mrb[0].mxu0
      %v309 = vadd.f32 %v255, %v308
      %v310 = vpop.f32.mrb[0].mxu0
      %v311 = vpop.f32.mrb[0].mxu0
      %v312 = vpop.f32.mrb[0].mxu0
      %313 = vdwg.mxu0
      %v314 = vmax.f32 %v309, 0.0
      %vm315 = vcmask 130048
      %316 = vst.msk [vmem:[%s238] sm:$0xff] %vm315, %v314
      %v317 = vsel %vm315, %v314, 0.0
      %318 = vadd.xlane.f32.xlu0 %v317
      %v319 = vpop.xlane.xlu0 %318
      %v320 = vmul.f32 %v314, %v314
      %v321 = vsel %vm315, %v320, 0.0
      %322 = vadd.xlane.f32.xlu0 %v321
      %v323 = vpop.xlane.xlu0 %322
      %vm324 = vcmask 7168
      %v325 = vsel %vm324, %v319, %v323
      %vm326 = vcmask 15360
      %327 = vst.msk [vmem:[%s245] sm:$0xff] %vm326, %v325
      %p328 = scmp.lt.s32.totalorder %s20, 1
      %s329 = scalar_select %p328, %s20, 1
      %p330 = scmp.lt.s32.totalorder %s21, 0
      %s331 = scalar_select %p330, %s21, 0
      %s332 = sadd.s32 %s331, %s329
      %s333 = smul.addr %s332, 8
      %s334 = scalar_lea.vmem %s3, %s333
      %p335 = scmp.lt.s32.totalorder %s20, 1
      %s336 = scalar_select %p335, %s20, 1
      %p337 = scmp.lt.s32.totalorder %s21, 0
      %s338 = scalar_select %p337, %s21, 0
      %s339 = sadd.s32 %s338, %s336
      %s340 = smul.addr %s339, 8
      %s341 = scalar_lea.vmem %s4, %s340
      // Predicated region
      $region33: #{double_conv.6} parent=31 // pred_check
        %p342 = pneg %p118
      $region34: #{double_conv.6} parent=31 // pred_check_branch
        %344 = sbr.rel (%p342) target = $region36
      $region35: #{double_conv.6} parent=31 // pred_region
        _
      $region36: #{double_conv.6} parent=31 // pred_fallthru
        _
      // Predicated region
      $region37: #{double_conv.6} parent=31 // pred_check
        %p345 = pneg %p146
      $region38: #{double_conv.6} parent=31 // pred_check_branch
        %347 = sbr.rel (%p345) target = $region40
      $region39: #{double_conv.6} parent=31 // pred_region
        _
      $region40: #{double_conv.6} parent=31 // pred_fallthru
        _
    $region32: #{double_conv.6} parent=5 // pred_fallthru
      _
    %p348 = scmp.le.s32.totalorder 2, %s11
    // Predicated region
    $region41: #{double_conv.6} parent=5 // pred_check
      %p349 = pneg %p348
    $region42: #{double_conv.6} parent=5 // pred_check_branch
      %351 = sbr.rel (%p349) target = $region44
    $region43: #{double_conv.6} parent=5 // pred_region
      %s352 = ssub.s32 %s11, 2
      // Predicated region
      $region45: #{double_conv.6} parent=43 // pred_check
        %p353 = pneg %p124
      $region46: #{double_conv.6} parent=43 // pred_check_branch
        %355 = sbr.rel (%p353) target = $region48
      $region47: #{double_conv.6} parent=43 // pred_region
        %p356 = scmp.lt.s32.totalorder %s22, 1
        %s357 = scalar_select %p356, %s22, 1
        %p358 = scmp.lt.s32.totalorder %s23, 0
        %s359 = scalar_select %p358, %s23, 0
        %s360 = sadd.s32 %s359, %s357
        %s361 = smul.addr %s360, 8
        %s362 = scalar_lea.vmem %s3, %s361
      $region48: #{double_conv.6} parent=43 // pred_fallthru
        _
      // Predicated region
      $region49: #{double_conv.6} parent=43 // pred_check
        %p363 = pneg %p152
      $region50: #{double_conv.6} parent=43 // pred_check_branch
        %365 = sbr.rel (%p363) target = $region52
      $region51: #{double_conv.6} parent=43 // pred_region
        %p366 = scmp.lt.s32.totalorder %s22, 1
        %s367 = scalar_select %p366, %s22, 1
        %p368 = scmp.lt.s32.totalorder %s23, 0
        %s369 = scalar_select %p368, %s23, 0
        %s370 = sadd.s32 %s369, %s367
        %s371 = smul.addr %s370, 8
        %s372 = scalar_lea.vmem %s4, %s371
      $region52: #{double_conv.6} parent=43 // pred_fallthru
        _
    $region44: #{double_conv.6} parent=5 // pred_fallthru
      _
  $region6: #{double_conv.6} parent=0 // loop_footer
    %s15 = sadd.s32 1, %s11
  $region7: #{double_conv.6} parent=0 // loop_footer_branch
    %10 = sbr.rel target = $region3
  $region8: #{double_conv.6} parent=0 // loop_exit
    _

</llo_original>
